<compile_context>
chip_gen: v7x
topology: tpu7x:2x2x1
jax: 0.10.0
libtpu: 0.0.40
codegen_flags: <defaults>
</compile_context>

<pallas_src>
import math
import functools

import numpy as np
import jax
import jax.numpy as jnp
from jax import lax
from jax.experimental import pallas as pl
from jax.experimental.pallas import tpu as pltpu

_ROW_CHUNK = 8  # output rows accumulated in registers per store (one sublane tile)


# ------------------------------ helpers -------------------------------------
def split_filters(filters, groups):
    """Same semantics as MixNet's splitFilters: even split, remainder -> group 0."""
    split = [filters // groups] * groups
    split[0] += filters - sum(split)
    return split


def _same_padding(h, w, k, stride):
    oh = math.ceil(h / stride)
    ow = math.ceil(w / stride)
    pad_h = max((oh - 1) * stride + k - h, 0)
    pad_w = max((ow - 1) * stride + k - w, 0)
    return oh, ow, (pad_h // 2, pad_h - pad_h // 2), (pad_w // 2, pad_w - pad_w // 2)


def _vmem_capacity_bytes():
    try:
        cap = getattr(pltpu.get_tpu_info(), "vmem_capacity_bytes", None)
        if cap:
            return int(cap)
    except Exception:
        pass
    return 64 << 20   # conservative default (v7x per-TC VMEM)


def _padded_block_bytes(shape, itemsize):
    """Bytes of a block after (8,128) layout padding of the last two dims."""
    sl = -(-int(shape[-2]) // 8) * 8
    ln = -(-int(shape[-1]) // 128) * 128
    lead = 1
    for d in shape[:-2]:
        lead *= int(d)
    return lead * sl * ln * itemsize


def _pick_row_strip(oh, kmax, wpc, itemsize, capacity, batch, row_tile):
    """Pick the output-row strip height th (divisor of oh, multiple of halo_blk)."""
    halo = kmax - 1
    halo_blk = max(8, -(-halo // 8) * 8)
    budget = max(capacity // 32, 2 << 20)     # ~2 MiB on v7x, ~4 MiB on 128 MiB parts
    full_bytes = _padded_block_bytes((oh + halo, wpc), itemsize)
    cap_rows = row_tile if row_tile is not None else max(
        halo_blk, budget // max(wpc * itemsize, 1))
    cands = [th for th in range(halo_blk, oh, halo_blk)
             if oh % th == 0 and th <= cap_rows]
    want_multi = ((row_tile is not None and row_tile < oh)
                  or full_bytes > budget
                  or (batch == 1 and oh >= 2 * halo_blk))   # keep both v7x TCs busy
    if want_multi and cands:
        return max(cands), halo_blk
    return oh, halo_blk


# ------------------------------ Pallas kernel --------------------------------
def _mdconv_kernel(*refs, kmax, c, owc, th, body_rows, halo_blk, has_halo):
    """Fused stride-1 depthwise conv for one (image, row-strip) grid cell.

    Lane dim of every block is the fused W*C axis.  Accumulation is entirely in
    registers; one store per _ROW_CHUNK output rows; no VMEM accumulator and no
    full-strip stitch.
    """
    if has_halo:
        x_ref, halo_ref, w_ref, o_ref, xtail = refs
        # Tiny stitch: last 8 body rows + halo rows -> one contiguous scratch
        # window, so boundary-crossing tap windows are plain pl.ds loads.
        # This is O(kmax) rows, not O(strip).
        xtail[pl.ds(0, _ROW_CHUNK), :] = x_ref[0, pl.ds(body_rows - _ROW_CHUNK,
                                                        _ROW_CHUNK), :]
        xtail[pl.ds(_ROW_CHUNK, halo_blk), :] = halo_ref[0, :, :]
    else:
        x_ref, w_ref, o_ref = refs
        xtail = None

    def load_rows(start, nrows):
        # start / nrows are Python ints -> the body/tail split is fully static.
        if (not has_halo) or (start + nrows <= body_rows):
            v = x_ref[0, pl.ds(start, nrows), :]
        else:
            v = xtail[pl.ds(start - (body_rows - _ROW_CHUNK), nrows), :]
        # One upcast per loaded row window (not per tap).
        # TODO(synk): for bf16-heavy v5e use, an f32 staging scratch would make
        # this a single upcast per input row instead of per (chunk, kh).
        return v.astype(jnp.float32)

    for r0 in range(0, th, _ROW_CHUNK):                 # static, fully unrolled
        rows = min(_ROW_CHUNK, th - r0)
        # Two register accumulators (even/odd taps) shorten the dependency chain.
        acc0 = jnp.zeros((rows, owc), jnp.float32)
        acc1 = jnp.zeros((rows, owc), jnp.float32)
        tap = 0
        for kh in range(kmax):
            xrow = load_rows(r0 + kh, rows)             # (rows, WP*C) f32
            for kw in range(kmax):
                w_tap = w_ref[kh, kw, :, :]             # (8, OW*C), VMEM-resident
                if rows != _ROW_CHUNK:
                    w_tap = w_tap[:rows]
                # kw tap = constant lane shift of the fused W*C axis.
                term = xrow[:, kw * c: kw * c + owc] * w_tap
                if tap & 1:
                    acc1 = acc1 + term
                else:
                    acc0 = acc0 + term
                tap += 1
        o_ref[0, pl.ds(r0, rows), :] = (acc0 + acc1).astype(o_ref.dtype)


# ------------------------------ wrapper --------------------------------------
def fused_depthwise_same_stride1(x_nchw, w_kkc, row_tile=None):
    """Depthwise conv (groups == C), stride 1, TF 'same' padding, all channel
    groups fused.  x_nchw: (N, C, H, W); w_kkc: (kmax, kmax, C) -> (N, C, H, W)."""
    n, c, h, w = x_nchw.shape
    kmax = int(w_kkc.shape[0])
    itemsize = jnp.dtype(x_nchw.dtype).itemsize

    oh, ow, (pt, _pb), (pleft, pright) = _same_padding(h, w, kmax, 1)
    wp = w + pleft + pright
    wpc, owc = wp * c, ow * c

    capacity = _vmem_capacity_bytes()
    th, halo_blk = _pick_row_strip(oh, kmax, wpc, itemsize, capacity, n, row_tile)
    n_strips = oh // th
    has_halo = n_strips > 1
    if has_halo:
        body_rows = th
        hp_tot = oh + halo_blk          # room for the last strip's halo block
    else:
        body_rows = oh + kmax - 1       # whole padded image in one block
        hp_tot = body_rows

    # ---- glue: single transpose+pad+reshape chain (fuses to ~one HBM pass) ----
    x_nhwc = jnp.transpose(x_nchw, (0, 2, 3, 1))
    x_pad = jnp.pad(x_nhwc, ((0, 0), (pt, hp_tot - h - pt),
                             (pleft, pright), (0, 0)))
    x_flat = x_pad.reshape(n, hp_tot, wpc)

    # Weights pre-tiled along OW and the 8-row chunk: every in-kernel tap multiply
    # is a plain (8, OW*C) VPU op with no broadcasts.  Stays VMEM-resident.
    w_tiled = jnp.broadcast_to(
        w_kkc.astype(jnp.float32)[:, :, None, None, :],
        (kmax, kmax, _ROW_CHUNK, ow, c)).reshape(kmax, kmax, _ROW_CHUNK, owc)

    in_specs = [pl.BlockSpec((1, body_rows, wpc), lambda b, t: (b, t, 0))]
    inputs = [x_flat]
    if has_halo:
        ratio = th // halo_blk
        # TODO(synk): a pl.Element overlapping-window spec would remove the small
        # (halo_blk - (kmax-1))-row over-fetch of this halo block.
        in_specs.append(pl.BlockSpec(
            (1, halo_blk, wpc), lambda b, t, _r=ratio: (b, (t + 1) * _r, 0)))
        inputs.append(x_flat)
    in_specs.append(pl.BlockSpec((kmax, kmax, _ROW_CHUNK, owc),
                                 lambda b, t: (0, 0, 0, 0)))
    inputs.append(w_tiled)

    scratch_shapes = []
    if has_halo:
        scratch_shapes.append(pltpu.VMEM((_ROW_CHUNK + halo_blk, wpc),
                                         x_nchw.dtype))

    kern = functools.partial(_mdconv_kernel, kmax=kmax, c=c, owc=owc, th=th,
                             body_rows=body_rows, halo_blk=halo_blk,
                             has_halo=has_halo)

    # VMEM budget from the actual layout-padded block sizes (double-buffered).
    blk_body = _padded_block_bytes((body_rows, wpc), itemsize)
    blk_halo = _padded_block_bytes((halo_blk, wpc), itemsize) if has_halo else 0
    blk_out = _padded_block_bytes((th, owc), itemsize)
    blk_w = _padded_block_bytes((kmax, kmax, _ROW_CHUNK, owc), 4)
    blk_scr = (_padded_block_bytes((_ROW_CHUNK + halo_blk, wpc), itemsize)
               if has_halo else 0)
    need = 2 * (blk_body + blk_halo + blk_out + blk_w) + blk_scr
    vmem_limit = int(min(max(2 * need + (4 << 20), 16 << 20), capacity * 3 // 4))

    cost = pl.CostEstimate(
        flops=2 * kmax * kmax * n * oh * ow * c,
        transcendentals=0,
        bytes_accessed=int((x_flat.size + n * oh * owc) * itemsize
                           + w_tiled.size * 4 + n * n_strips * blk_halo),
    )

    out_flat = pl.pallas_call(
        kern,
        out_shape=jax.ShapeDtypeStruct((n, oh, owc), x_nchw.dtype),
        grid=(n, n_strips),
        in_specs=in_specs,
        out_specs=pl.BlockSpec((1, th, owc), lambda b, t: (b, t, 0)),
        scratch_shapes=scratch_shapes,
        compiler_params=pltpu.CompilerParams(
            dimension_semantics=("parallel", "parallel"),
            vmem_limit_bytes=vmem_limit),
        cost_estimate=cost,
    )(*inputs)

    return jnp.transpose(out_flat.reshape(n, oh, ow, c), (0, 3, 1, 2))


# ------------------------------ MDConv module --------------------------------
class MDConvPallas:
    """Mixed depthwise conv (MixNet MDConv): contiguous channel groups, each with
    its own odd kernel size, fused into ONE Pallas depthwise conv by centering
    every k_i x k_i filter inside a kmax x kmax zero canvas (exact for odd k,
    TF 'same' padding, stride 1)."""

    def __init__(self, filters, kernel_size, strides=1, dilated=False, key=None):
        # TODO(synk): `dilated` is stored but never used by the reference module's
        # convs (no dilation is ever passed), so dilation stays 1 here as well.
        self._dilated = dilated
        self._groups = len(kernel_size)
        self._kernel_sizes = list(kernel_size)
        self._stride = int(strides)
        self._splits = split_filters(filters, self._groups)

        key = jax.random.PRNGKey(42) if key is None else key
        self._weights = []
        for i, k in enumerate(self._kernel_sizes):
            key, sub = jax.random.split(key)
            bound = 1.0 / math.sqrt(k * k)       # fan_in = (in/groups) * k * k
            wgt = jax.random.uniform(sub, (self._splits[i], 1, k, k),
                                     jnp.float32, -bound, bound)
            self._weights.append(wgt)

        self._kmax = max(self._kernel_sizes)
        # MixNet only uses odd kernel sizes; centered fusion needs same parity.
        assert all((self._kmax - k) % 2 == 0 for k in self._kernel_sizes)
        taps = []
        for wgt, k in zip(self._weights, self._kernel_sizes):
            wk = jnp.transpose(wgt[:, 0, :, :], (1, 2, 0))          # (k, k, Cg)
            d = (self._kmax - k) // 2
            taps.append(jnp.pad(wk, ((d, d), (d, d), (0, 0))))
        self._fused_w = jnp.concatenate(taps, axis=-1)              # (kmax, kmax, C)

    def __call__(self, x, row_tile=None):        # x: (N, C, H, W)
        if self._stride == 1:
            return fused_depthwise_same_stride1(x, self._fused_w, row_tile=row_tile)
        # TODO(synk): stride>1 Pallas path (strided taps in the fused W*C lane
        # axis) is not implemented; use the exact per-group lax conv fallback.
        return _ref_mdconv(self, x)


# ------------------------------ reference (lax) -------------------------------
def _ref_depthwise(x_nchw, w_oihw, stride):
    cg = x_nchw.shape[1]
    k = w_oihw.shape[-1]
    _, _, (pt, pb), (pleft, pright) = _same_padding(
        x_nchw.shape[2], x_nchw.shape[3], k, stride)
    return lax.conv_general_dilated(
        x_nchw, w_oihw, (stride, stride), ((pt, pb), (pleft, pright)),
        feature_group_count=cg,
        dimension_numbers=("NCHW", "OIHW", "NCHW"),
        precision=lax.Precision.HIGHEST)


def _ref_mdconv(mod, x):
    splits = split_filters(x.shape[1], mod._groups)
    outs, start = [], 0
    for i in range(mod._groups):
        xs = x[:, start:start + splits[i]]
        start += splits[i]
        outs.append(_ref_depthwise(xs, mod._weights[i], mod._stride))
    return jnp.concatenate(outs, axis=1)


# ------------------------------ main ------------------------------------------
if __name__ == "__main__":
    key = jax.random.PRNGKey(0)
    N, C, H, W = 2, 8, 16, 16
    kernel_sizes = [3, 5, 7]                 # splits -> [4, 2, 2]
    x = jax.random.normal(key, (N, C, H, W), jnp.float32)

    mdconv = MDConvPallas(filters=C, kernel_size=kernel_sizes, strides=1)
    ref = jax.block_until_ready(_ref_mdconv(mdconv, x))

    # Tiled path: 2 row strips per image -> exercises the halo spec + tail scratch.
    out_tiled = jax.block_until_ready(mdconv(x, row_tile=8))
    # Default path: one strip per image -> exercises the no-halo code path.
    out_full = jax.block_until_ready(mdconv(x))

    for out in (out_tiled, out_full):
        assert out.shape == (N, C, H, W), out.shape
        np.testing.assert_allclose(np.asarray(out), np.asarray(ref),
                                   rtol=1e-5, atol=1e-5)
    print("KERNEL_OK")
</pallas_src>

<mosaic_0001>
module attributes {stable_mosaic.version = 11 : i64} {
  func.func @_mdconv_kernel(%arg0: i32, %arg1: i32, %arg2: memref<1x8x176xf32, #tpu.memory_space<vmem>>, %arg3: memref<1x8x176xf32, #tpu.memory_space<vmem>>, %arg4: memref<7x7x8x128xf32, #tpu.memory_space<vmem>>, %arg5: memref<1x8x128xf32, #tpu.memory_space<vmem>>, %arg6: memref<16x176xf32, #tpu.memory_space<vmem>>) attributes {dimension_semantics = [#tpu.dimension_semantics<parallel>, #tpu.dimension_semantics<parallel>], iteration_bounds = array<i64: 2, 2>, scalar_prefetch = 0 : i64, scratch_operands = 1 : i64, tpu.core_type = #tpu.core_type<tc>, window_params = [{transform_indices = @transform_0, window_bounds = array<i64: 1, 8, 176>}, {transform_indices = @transform_1, window_bounds = array<i64: 1, 8, 176>}, {pipeline_mode = #tpu.pipeline_mode<synchronous>, transform_indices = @transform_2, window_bounds = array<i64: 7, 7, 8, 128>}, {transform_indices = @transform_3, window_bounds = array<i64: 1, 8, 128>}]} {
    %c0 = arith.constant 0 : index
    %c0_0 = arith.constant 0 : index
    %c0_1 = arith.constant 0 : index
    %0 = vector.load %arg2[%c0, %c0_0, %c0_1] : memref<1x8x176xf32, #tpu.memory_space<vmem>>, vector<1x8x176xf32>
    %1 = vector.shape_cast %0 : vector<1x8x176xf32> to vector<8x176xf32>
    %c0_2 = arith.constant 0 : index
    %c0_3 = arith.constant 0 : index
    %2 = vector.load %arg6[%c0_2, %c0_3] : memref<16x176xf32, #tpu.memory_space<vmem>>, vector<8x176xf32>
    tpu.vector_store %arg6[%c0_2, %c0_3], %1 {strides = array<i32>} : memref<16x176xf32, #tpu.memory_space<vmem>>, vector<8x176xf32>,
    %c0_4 = arith.constant 0 : index
    %c0_5 = arith.constant 0 : index
    %c0_6 = arith.constant 0 : index
    %3 = vector.load %arg3[%c0_4, %c0_5, %c0_6] : memref<1x8x176xf32, #tpu.memory_space<vmem>>, vector<1x8x176xf32>
    %4 = vector.shape_cast %3 : vector<1x8x176xf32> to vector<8x176xf32>
    %c8 = arith.constant 8 : index
    %c0_7 = arith.constant 0 : index
    %5 = vector.load %arg6[%c8, %c0_7] : memref<16x176xf32, #tpu.memory_space<vmem>>, vector<8x176xf32>
    tpu.vector_store %arg6[%c8, %c0_7], %4 {strides = array<i32>} : memref<16x176xf32, #tpu.memory_space<vmem>>, vector<8x176xf32>,
    %cst = arith.constant 0.000000e+00 : f32
    %6 = vector.broadcast %cst : f32 to vector<8x128xf32>
    %cst_8 = arith.constant 0.000000e+00 : f32
    %7 = vector.broadcast %cst_8 : f32 to vector<8x128xf32>
    %c0_9 = arith.constant 0 : index
    %c0_10 = arith.constant 0 : index
    %c0_11 = arith.constant 0 : index
    %8 = vector.load %arg2[%c0_9, %c0_10, %c0_11] : memref<1x8x176xf32, #tpu.memory_space<vmem>>, vector<1x8x176xf32>
    %9 = vector.shape_cast %8 : vector<1x8x176xf32> to vector<8x176xf32>
    %c0_12 = arith.constant 0 : index
    %c0_13 = arith.constant 0 : index
    %c0_14 = arith.constant 0 : index
    %c0_15 = arith.constant 0 : index
    %10 = vector.load %arg4[%c0_12, %c0_13, %c0_14, %c0_15] : memref<7x7x8x128xf32, #tpu.memory_space<vmem>>, vector<1x1x8x128xf32>
    %11 = vector.shape_cast %10 : vector<1x1x8x128xf32> to vector<8x128xf32>
    %12 = vector.extract_strided_slice %9 {offsets = [0, 0], sizes = [8, 128], strides = [1, 1]} : vector<8x176xf32> to vector<8x128xf32>
    %13 = arith.mulf %12, %11 : vector<8x128xf32>
    %14 = arith.addf %6, %13 : vector<8x128xf32>
    %c0_16 = arith.constant 0 : index
    %c1 = arith.constant 1 : index
    %c0_17 = arith.constant 0 : index
    %c0_18 = arith.constant 0 : index
    %15 = vector.load %arg4[%c0_16, %c1, %c0_17, %c0_18] : memref<7x7x8x128xf32, #tpu.memory_space<vmem>>, vector<1x1x8x128xf32>
    %16 = vector.shape_cast %15 : vector<1x1x8x128xf32> to vector<8x128xf32>
    %17 = vector.extract_strided_slice %9 {offsets = [0, 8], sizes = [8, 128], strides = [1, 1]} : vector<8x176xf32> to vector<8x128xf32>
    %18 = arith.mulf %17, %16 : vector<8x128xf32>
    %19 = arith.addf %7, %18 : vector<8x128xf32>
    %c0_19 = arith.constant 0 : index
    %c2 = arith.constant 2 : index
    %c0_20 = arith.constant 0 : index
    %c0_21 = arith.constant 0 : index
    %20 = vector.load %arg4[%c0_19, %c2, %c0_20, %c0_21] : memref<7x7x8x128xf32, #tpu.memory_space<vmem>>, vector<1x1x8x128xf32>
    %21 = vector.shape_cast %20 : vector<1x1x8x128xf32> to vector<8x128xf32>
    %22 = vector.extract_strided_slice %9 {offsets = [0, 16], sizes = [8, 128], strides = [1, 1]} : vector<8x176xf32> to vector<8x128xf32>
    %23 = arith.mulf %22, %21 : vector<8x128xf32>
    %24 = arith.addf %14, %23 : vector<8x128xf32>
    %c0_22 = arith.constant 0 : index
    %c3 = arith.constant 3 : index
    %c0_23 = arith.constant 0 : index
    %c0_24 = arith.constant 0 : index
    %25 = vector.load %arg4[%c0_22, %c3, %c0_23, %c0_24] : memref<7x7x8x128xf32, #tpu.memory_space<vmem>>, vector<1x1x8x128xf32>
    %26 = vector.shape_cast %25 : vector<1x1x8x128xf32> to vector<8x128xf32>
    %27 = vector.extract_strided_slice %9 {offsets = [0, 24], sizes = [8, 128], strides = [1, 1]} : vector<8x176xf32> to vector<8x128xf32>
    %28 = arith.mulf %27, %26 : vector<8x128xf32>
    %29 = arith.addf %19, %28 : vector<8x128xf32>
    %c0_25 = arith.constant 0 : index
    %c4 = arith.constant 4 : index
    %c0_26 = arith.constant 0 : index
    %c0_27 = arith.constant 0 : index
    %30 = vector.load %arg4[%c0_25, %c4, %c0_26, %c0_27] : memref<7x7x8x128xf32, #tpu.memory_space<vmem>>, vector<1x1x8x128xf32>
    %31 = vector.shape_cast %30 : vector<1x1x8x128xf32> to vector<8x128xf32>
    %32 = vector.extract_strided_slice %9 {offsets = [0, 32], sizes = [8, 128], strides = [1, 1]} : vector<8x176xf32> to vector<8x128xf32>
    %33 = arith.mulf %32, %31 : vector<8x128xf32>
    %34 = arith.addf %24, %33 : vector<8x128xf32>
    %c0_28 = arith.constant 0 : index
    %c5 = arith.constant 5 : index
    %c0_29 = arith.constant 0 : index
    %c0_30 = arith.constant 0 : index
    %35 = vector.load %arg4[%c0_28, %c5, %c0_29, %c0_30] : memref<7x7x8x128xf32, #tpu.memory_space<vmem>>, vector<1x1x8x128xf32>
    %36 = vector.shape_cast %35 : vector<1x1x8x128xf32> to vector<8x128xf32>
    %37 = vector.extract_strided_slice %9 {offsets = [0, 40], sizes = [8, 128], strides = [1, 1]} : vector<8x176xf32> to vector<8x128xf32>
    %38 = arith.mulf %37, %36 : vector<8x128xf32>
    %39 = arith.addf %29, %38 : vector<8x128xf32>
    %c0_31 = arith.constant 0 : index
    %c6 = arith.constant 6 : index
    %c0_32 = arith.constant 0 : index
    %c0_33 = arith.constant 0 : index
    %40 = vector.load %arg4[%c0_31, %c6, %c0_32, %c0_33] : memref<7x7x8x128xf32, #tpu.memory_space<vmem>>, vector<1x1x8x128xf32>
    %41 = vector.shape_cast %40 : vector<1x1x8x128xf32> to vector<8x128xf32>
    %42 = vector.extract_strided_slice %9 {offsets = [0, 48], sizes = [8, 128], strides = [1, 1]} : vector<8x176xf32> to vector<8x128xf32>
    %43 = arith.mulf %42, %41 : vector<8x128xf32>
    %44 = arith.addf %34, %43 : vector<8x128xf32>
    %c1_34 = arith.constant 1 : index
    %c0_35 = arith.constant 0 : index
    %45 = vector.load %arg6[%c1_34, %c0_35] : memref<16x176xf32, #tpu.memory_space<vmem>>, vector<8x176xf32>
    %c1_36 = arith.constant 1 : index
    %c0_37 = arith.constant 0 : index
    %c0_38 = arith.constant 0 : index
    %c0_39 = arith.constant 0 : index
    %46 = vector.load %arg4[%c1_36, %c0_37, %c0_38, %c0_39] : memref<7x7x8x128xf32, #tpu.memory_space<vmem>>, vector<1x1x8x128xf32>
    %47 = vector.shape_cast %46 : vector<1x1x8x128xf32> to vector<8x128xf32>
    %48 = vector.extract_strided_slice %45 {offsets = [0, 0], sizes = [8, 128], strides = [1, 1]} : vector<8x176xf32> to vector<8x128xf32>
    %49 = arith.mulf %48, %47 : vector<8x128xf32>
    %50 = arith.addf %39, %49 : vector<8x128xf32>
    %c1_40 = arith.constant 1 : index
    %c1_41 = arith.constant 1 : index
    %c0_42 = arith.constant 0 : index
    %c0_43 = arith.constant 0 : index
    %51 = vector.load %arg4[%c1_40, %c1_41, %c0_42, %c0_43] : memref<7x7x8x128xf32, #tpu.memory_space<vmem>>, vector<1x1x8x128xf32>
    %52 = vector.shape_cast %51 : vector<1x1x8x128xf32> to vector<8x128xf32>
    %53 = vector.extract_strided_slice %45 {offsets = [0, 8], sizes = [8, 128], strides = [1, 1]} : vector<8x176xf32> to vector<8x128xf32>
    %54 = arith.mulf %53, %52 : vector<8x128xf32>
    %55 = arith.addf %44, %54 : vector<8x128xf32>
    %c1_44 = arith.constant 1 : index
    %c2_45 = arith.constant 2 : index
    %c0_46 = arith.constant 0 : index
    %c0_47 = arith.constant 0 : index
    %56 = vector.load %arg4[%c1_44, %c2_45, %c0_46, %c0_47] : memref<7x7x8x128xf32, #tpu.memory_space<vmem>>, vector<1x1x8x128xf32>
    %57 = vector.shape_cast %56 : vector<1x1x8x128xf32> to vector<8x128xf32>
    %58 = vector.extract_strided_slice %45 {offsets = [0, 16], sizes = [8, 128], strides = [1, 1]} : vector<8x176xf32> to vector<8x128xf32>
    %59 = arith.mulf %58, %57 : vector<8x128xf32>
    %60 = arith.addf %50, %59 : vector<8x128xf32>
    %c1_48 = arith.constant 1 : index
    %c3_49 = arith.constant 3 : index
    %c0_50 = arith.constant 0 : index
    %c0_51 = arith.constant 0 : index
    %61 = vector.load %arg4[%c1_48, %c3_49, %c0_50, %c0_51] : memref<7x7x8x128xf32, #tpu.memory_space<vmem>>, vector<1x1x8x128xf32>
    %62 = vector.shape_cast %61 : vector<1x1x8x128xf32> to vector<8x128xf32>
    %63 = vector.extract_strided_slice %45 {offsets = [0, 24], sizes = [8, 128], strides = [1, 1]} : vector<8x176xf32> to vector<8x128xf32>
    %64 = arith.mulf %63, %62 : vector<8x128xf32>
    %65 = arith.addf %55, %64 : vector<8x128xf32>
    %c1_52 = arith.constant 1 : index
    %c4_53 = arith.constant 4 : index
    %c0_54 = arith.constant 0 : index
    %c0_55 = arith.constant 0 : index
    %66 = vector.load %arg4[%c1_52, %c4_53, %c0_54, %c0_55] : memref<7x7x8x128xf32, #tpu.memory_space<vmem>>, vector<1x1x8x128xf32>
    %67 = vector.shape_cast %66 : vector<1x1x8x128xf32> to vector<8x128xf32>
    %68 = vector.extract_strided_slice %45 {offsets = [0, 32], sizes = [8, 128], strides = [1, 1]} : vector<8x176xf32> to vector<8x128xf32>
    %69 = arith.mulf %68, %67 : vector<8x128xf32>
    %70 = arith.addf %60, %69 : vector<8x128xf32>
    %c1_56 = arith.constant 1 : index
    %c5_57 = arith.constant 5 : index
    %c0_58 = arith.constant 0 : index
    %c0_59 = arith.constant 0 : index
    %71 = vector.load %arg4[%c1_56, %c5_57, %c0_58, %c0_59] : memref<7x7x8x128xf32, #tpu.memory_space<vmem>>, vector<1x1x8x128xf32>
    %72 = vector.shape_cast %71 : vector<1x1x8x128xf32> to vector<8x128xf32>
    %73 = vector.extract_strided_slice %45 {offsets = [0, 40], sizes = [8, 128], strides = [1, 1]} : vector<8x176xf32> to vector<8x128xf32>
    %74 = arith.mulf %73, %72 : vector<8x128xf32>
    %75 = arith.addf %65, %74 : vector<8x128xf32>
    %c1_60 = arith.constant 1 : index
    %c6_61 = arith.constant 6 : index
    %c0_62 = arith.constant 0 : index
    %c0_63 = arith.constant 0 : index
    %76 = vector.load %arg4[%c1_60, %c6_61, %c0_62, %c0_63] : memref<7x7x8x128xf32, #tpu.memory_space<vmem>>, vector<1x1x8x128xf32>
    %77 = vector.shape_cast %76 : vector<1x1x8x128xf32> to vector<8x128xf32>
    %78 = vector.extract_strided_slice %45 {offsets = [0, 48], sizes = [8, 128], strides = [1, 1]} : vector<8x176xf32> to vector<8x128xf32>
    %79 = arith.mulf %78, %77 : vector<8x128xf32>
    %80 = arith.addf %70, %79 : vector<8x128xf32>
    %c2_64 = arith.constant 2 : index
    %c0_65 = arith.constant 0 : index
    %81 = vector.load %arg6[%c2_64, %c0_65] : memref<16x176xf32, #tpu.memory_space<vmem>>, vector<8x176xf32>
    %c2_66 = arith.constant 2 : index
    %c0_67 = arith.constant 0 : index
    %c0_68 = arith.constant 0 : index
    %c0_69 = arith.constant 0 : index
    %82 = vector.load %arg4[%c2_66, %c0_67, %c0_68, %c0_69] : memref<7x7x8x128xf32, #tpu.memory_space<vmem>>, vector<1x1x8x128xf32>
    %83 = vector.shape_cast %82 : vector<1x1x8x128xf32> to vector<8x128xf32>
    %84 = vector.extract_strided_slice %81 {offsets = [0, 0], sizes = [8, 128], strides = [1, 1]} : vector<8x176xf32> to vector<8x128xf32>
    %85 = arith.mulf %84, %83 : vector<8x128xf32>
    %86 = arith.addf %75, %85 : vector<8x128xf32>
    %c2_70 = arith.constant 2 : index
    %c1_71 = arith.constant 1 : index
    %c0_72 = arith.constant 0 : index
    %c0_73 = arith.constant 0 : index
    %87 = vector.load %arg4[%c2_70, %c1_71, %c0_72, %c0_73] : memref<7x7x8x128xf32, #tpu.memory_space<vmem>>, vector<1x1x8x128xf32>
    %88 = vector.shape_cast %87 : vector<1x1x8x128xf32> to vector<8x128xf32>
    %89 = vector.extract_strided_slice %81 {offsets = [0, 8], sizes = [8, 128], strides = [1, 1]} : vector<8x176xf32> to vector<8x128xf32>
    %90 = arith.mulf %89, %88 : vector<8x128xf32>
    %91 = arith.addf %80, %90 : vector<8x128xf32>
    %c2_74 = arith.constant 2 : index
    %c2_75 = arith.constant 2 : index
    %c0_76 = arith.constant 0 : index
    %c0_77 = arith.constant 0 : index
    %92 = vector.load %arg4[%c2_74, %c2_75, %c0_76, %c0_77] : memref<7x7x8x128xf32, #tpu.memory_space<vmem>>, vector<1x1x8x128xf32>
    %93 = vector.shape_cast %92 : vector<1x1x8x128xf32> to vector<8x128xf32>
    %94 = vector.extract_strided_slice %81 {offsets = [0, 16], sizes = [8, 128], strides = [1, 1]} : vector<8x176xf32> to vector<8x128xf32>
    %95 = arith.mulf %94, %93 : vector<8x128xf32>
    %96 = arith.addf %86, %95 : vector<8x128xf32>
    %c2_78 = arith.constant 2 : index
    %c3_79 = arith.constant 3 : index
    %c0_80 = arith.constant 0 : index
    %c0_81 = arith.constant 0 : index
    %97 = vector.load %arg4[%c2_78, %c3_79, %c0_80, %c0_81] : memref<7x7x8x128xf32, #tpu.memory_space<vmem>>, vector<1x1x8x128xf32>
    %98 = vector.shape_cast %97 : vector<1x1x8x128xf32> to vector<8x128xf32>
    %99 = vector.extract_strided_slice %81 {offsets = [0, 24], sizes = [8, 128], strides = [1, 1]} : vector<8x176xf32> to vector<8x128xf32>
    %100 = arith.mulf %99, %98 : vector<8x128xf32>
    %101 = arith.addf %91, %100 : vector<8x128xf32>
    %c2_82 = arith.constant 2 : index
    %c4_83 = arith.constant 4 : index
    %c0_84 = arith.constant 0 : index
    %c0_85 = arith.constant 0 : index
    %102 = vector.load %arg4[%c2_82, %c4_83, %c0_84, %c0_85] : memref<7x7x8x128xf32, #tpu.memory_space<vmem>>, vector<1x1x8x128xf32>
    %103 = vector.shape_cast %102 : vector<1x1x8x128xf32> to vector<8x128xf32>
    %104 = vector.extract_strided_slice %81 {offsets = [0, 32], sizes = [8, 128], strides = [1, 1]} : vector<8x176xf32> to vector<8x128xf32>
    %105 = arith.mulf %104, %103 : vector<8x128xf32>
    %106 = arith.addf %96, %105 : vector<8x128xf32>
    %c2_86 = arith.constant 2 : index
    %c5_87 = arith.constant 5 : index
    %c0_88 = arith.constant 0 : index
    %c0_89 = arith.constant 0 : index
    %107 = vector.load %arg4[%c2_86, %c5_87, %c0_88, %c0_89] : memref<7x7x8x128xf32, #tpu.memory_space<vmem>>, vector<1x1x8x128xf32>
    %108 = vector.shape_cast %107 : vector<1x1x8x128xf32> to vector<8x128xf32>
    %109 = vector.extract_strided_slice %81 {offsets = [0, 40], sizes = [8, 128], strides = [1, 1]} : vector<8x176xf32> to vector<8x128xf32>
    %110 = arith.mulf %109, %108 : vector<8x128xf32>
    %111 = arith.addf %101, %110 : vector<8x128xf32>
    %c2_90 = arith.constant 2 : index
    %c6_91 = arith.constant 6 : index
    %c0_92 = arith.constant 0 : index
    %c0_93 = arith.constant 0 : index
    %112 = vector.load %arg4[%c2_90, %c6_91, %c0_92, %c0_93] : memref<7x7x8x128xf32, #tpu.memory_space<vmem>>, vector<1x1x8x128xf32>
    %113 = vector.shape_cast %112 : vector<1x1x8x128xf32> to vector<8x128xf32>
    %114 = vector.extract_strided_slice %81 {offsets = [0, 48], sizes = [8, 128], strides = [1, 1]} : vector<8x176xf32> to vector<8x128xf32>
    %115 = arith.mulf %114, %113 : vector<8x128xf32>
    %116 = arith.addf %106, %115 : vector<8x128xf32>
    %c3_94 = arith.constant 3 : index
    %c0_95 = arith.constant 0 : index
    %117 = vector.load %arg6[%c3_94, %c0_95] : memref<16x176xf32, #tpu.memory_space<vmem>>, vector<8x176xf32>
    %c3_96 = arith.constant 3 : index
    %c0_97 = arith.constant 0 : index
    %c0_98 = arith.constant 0 : index
    %c0_99 = arith.constant 0 : index
    %118 = vector.load %arg4[%c3_96, %c0_97, %c0_98, %c0_99] : memref<7x7x8x128xf32, #tpu.memory_space<vmem>>, vector<1x1x8x128xf32>
    %119 = vector.shape_cast %118 : vector<1x1x8x128xf32> to vector<8x128xf32>
    %120 = vector.extract_strided_slice %117 {offsets = [0, 0], sizes = [8, 128], strides = [1, 1]} : vector<8x176xf32> to vector<8x128xf32>
    %121 = arith.mulf %120, %119 : vector<8x128xf32>
    %122 = arith.addf %111, %121 : vector<8x128xf32>
    %c3_100 = arith.constant 3 : index
    %c1_101 = arith.constant 1 : index
    %c0_102 = arith.constant 0 : index
    %c0_103 = arith.constant 0 : index
    %123 = vector.load %arg4[%c3_100, %c1_101, %c0_102, %c0_103] : memref<7x7x8x128xf32, #tpu.memory_space<vmem>>, vector<1x1x8x128xf32>
    %124 = vector.shape_cast %123 : vector<1x1x8x128xf32> to vector<8x128xf32>
    %125 = vector.extract_strided_slice %117 {offsets = [0, 8], sizes = [8, 128], strides = [1, 1]} : vector<8x176xf32> to vector<8x128xf32>
    %126 = arith.mulf %125, %124 : vector<8x128xf32>
    %127 = arith.addf %116, %126 : vector<8x128xf32>
    %c3_104 = arith.constant 3 : index
    %c2_105 = arith.constant 2 : index
    %c0_106 = arith.constant 0 : index
    %c0_107 = arith.constant 0 : index
    %128 = vector.load %arg4[%c3_104, %c2_105, %c0_106, %c0_107] : memref<7x7x8x128xf32, #tpu.memory_space<vmem>>, vector<1x1x8x128xf32>
    %129 = vector.shape_cast %128 : vector<1x1x8x128xf32> to vector<8x128xf32>
    %130 = vector.extract_strided_slice %117 {offsets = [0, 16], sizes = [8, 128], strides = [1, 1]} : vector<8x176xf32> to vector<8x128xf32>
    %131 = arith.mulf %130, %129 : vector<8x128xf32>
    %132 = arith.addf %122, %131 : vector<8x128xf32>
    %c3_108 = arith.constant 3 : index
    %c3_109 = arith.constant 3 : index
    %c0_110 = arith.constant 0 : index
    %c0_111 = arith.constant 0 : index
    %133 = vector.load %arg4[%c3_108, %c3_109, %c0_110, %c0_111] : memref<7x7x8x128xf32, #tpu.memory_space<vmem>>, vector<1x1x8x128xf32>
    %134 = vector.shape_cast %133 : vector<1x1x8x128xf32> to vector<8x128xf32>
    %135 = vector.extract_strided_slice %117 {offsets = [0, 24], sizes = [8, 128], strides = [1, 1]} : vector<8x176xf32> to vector<8x128xf32>
    %136 = arith.mulf %135, %134 : vector<8x128xf32>
    %137 = arith.addf %127, %136 : vector<8x128xf32>
    %c3_112 = arith.constant 3 : index
    %c4_113 = arith.constant 4 : index
    %c0_114 = arith.constant 0 : index
    %c0_115 = arith.constant 0 : index
    %138 = vector.load %arg4[%c3_112, %c4_113, %c0_114, %c0_115] : memref<7x7x8x128xf32, #tpu.memory_space<vmem>>, vector<1x1x8x128xf32>
    %139 = vector.shape_cast %138 : vector<1x1x8x128xf32> to vector<8x128xf32>
    %140 = vector.extract_strided_slice %117 {offsets = [0, 32], sizes = [8, 128], strides = [1, 1]} : vector<8x176xf32> to vector<8x128xf32>
    %141 = arith.mulf %140, %139 : vector<8x128xf32>
    %142 = arith.addf %132, %141 : vector<8x128xf32>
    %c3_116 = arith.constant 3 : index
    %c5_117 = arith.constant 5 : index
    %c0_118 = arith.constant 0 : index
    %c0_119 = arith.constant 0 : index
    %143 = vector.load %arg4[%c3_116, %c5_117, %c0_118, %c0_119] : memref<7x7x8x128xf32, #tpu.memory_space<vmem>>, vector<1x1x8x128xf32>
    %144 = vector.shape_cast %143 : vector<1x1x8x128xf32> to vector<8x128xf32>
    %145 = vector.extract_strided_slice %117 {offsets = [0, 40], sizes = [8, 128], strides = [1, 1]} : vector<8x176xf32> to vector<8x128xf32>
    %146 = arith.mulf %145, %144 : vector<8x128xf32>
    %147 = arith.addf %137, %146 : vector<8x128xf32>
    %c3_120 = arith.constant 3 : index
    %c6_121 = arith.constant 6 : index
    %c0_122 = arith.constant 0 : index
    %c0_123 = arith.constant 0 : index
    %148 = vector.load %arg4[%c3_120, %c6_121, %c0_122, %c0_123] : memref<7x7x8x128xf32, #tpu.memory_space<vmem>>, vector<1x1x8x128xf32>
    %149 = vector.shape_cast %148 : vector<1x1x8x128xf32> to vector<8x128xf32>
    %150 = vector.extract_strided_slice %117 {offsets = [0, 48], sizes = [8, 128], strides = [1, 1]} : vector<8x176xf32> to vector<8x128xf32>
    %151 = arith.mulf %150, %149 : vector<8x128xf32>
    %152 = arith.addf %142, %151 : vector<8x128xf32>
    %c4_124 = arith.constant 4 : index
    %c0_125 = arith.constant 0 : index
    %153 = vector.load %arg6[%c4_124, %c0_125] : memref<16x176xf32, #tpu.memory_space<vmem>>, vector<8x176xf32>
    %c4_126 = arith.constant 4 : index
    %c0_127 = arith.constant 0 : index
    %c0_128 = arith.constant 0 : index
    %c0_129 = arith.constant 0 : index
    %154 = vector.load %arg4[%c4_126, %c0_127, %c0_128, %c0_129] : memref<7x7x8x128xf32, #tpu.memory_space<vmem>>, vector<1x1x8x128xf32>
    %155 = vector.shape_cast %154 : vector<1x1x8x128xf32> to vector<8x128xf32>
    %156 = vector.extract_strided_slice %153 {offsets = [0, 0], sizes = [8, 128], strides = [1, 1]} : vector<8x176xf32> to vector<8x128xf32>
    %157 = arith.mulf %156, %155 : vector<8x128xf32>
    %158 = arith.addf %147, %157 : vector<8x128xf32>
    %c4_130 = arith.constant 4 : index
    %c1_131 = arith.constant 1 : index
    %c0_132 = arith.constant 0 : index
    %c0_133 = arith.constant 0 : index
    %159 = vector.load %arg4[%c4_130, %c1_131, %c0_132, %c0_133] : memref<7x7x8x128xf32, #tpu.memory_space<vmem>>, vector<1x1x8x128xf32>
    %160 = vector.shape_cast %159 : vector<1x1x8x128xf32> to vector<8x128xf32>
    %161 = vector.extract_strided_slice %153 {offsets = [0, 8], sizes = [8, 128], strides = [1, 1]} : vector<8x176xf32> to vector<8x128xf32>
    %162 = arith.mulf %161, %160 : vector<8x128xf32>
    %163 = arith.addf %152, %162 : vector<8x128xf32>
    %c4_134 = arith.constant 4 : index
    %c2_135 = arith.constant 2 : index
    %c0_136 = arith.constant 0 : index
    %c0_137 = arith.constant 0 : index
    %164 = vector.load %arg4[%c4_134, %c2_135, %c0_136, %c0_137] : memref<7x7x8x128xf32, #tpu.memory_space<vmem>>, vector<1x1x8x128xf32>
    %165 = vector.shape_cast %164 : vector<1x1x8x128xf32> to vector<8x128xf32>
    %166 = vector.extract_strided_slice %153 {offsets = [0, 16], sizes = [8, 128], strides = [1, 1]} : vector<8x176xf32> to vector<8x128xf32>
    %167 = arith.mulf %166, %165 : vector<8x128xf32>
    %168 = arith.addf %158, %167 : vector<8x128xf32>
    %c4_138 = arith.constant 4 : index
    %c3_139 = arith.constant 3 : index
    %c0_140 = arith.constant 0 : index
    %c0_141 = arith.constant 0 : index
    %169 = vector.load %arg4[%c4_138, %c3_139, %c0_140, %c0_141] : memref<7x7x8x128xf32, #tpu.memory_space<vmem>>, vector<1x1x8x128xf32>
    %170 = vector.shape_cast %169 : vector<1x1x8x128xf32> to vector<8x128xf32>
    %171 = vector.extract_strided_slice %153 {offsets = [0, 24], sizes = [8, 128], strides = [1, 1]} : vector<8x176xf32> to vector<8x128xf32>
    %172 = arith.mulf %171, %170 : vector<8x128xf32>
    %173 = arith.addf %163, %172 : vector<8x128xf32>
    %c4_142 = arith.constant 4 : index
    %c4_143 = arith.constant 4 : index
    %c0_144 = arith.constant 0 : index
    %c0_145 = arith.constant 0 : index
    %174 = vector.load %arg4[%c4_142, %c4_143, %c0_144, %c0_145] : memref<7x7x8x128xf32, #tpu.memory_space<vmem>>, vector<1x1x8x128xf32>
    %175 = vector.shape_cast %174 : vector<1x1x8x128xf32> to vector<8x128xf32>
    %176 = vector.extract_strided_slice %153 {offsets = [0, 32], sizes = [8, 128], strides = [1, 1]} : vector<8x176xf32> to vector<8x128xf32>
    %177 = arith.mulf %176, %175 : vector<8x128xf32>
    %178 = arith.addf %168, %177 : vector<8x128xf32>
    %c4_146 = arith.constant 4 : index
    %c5_147 = arith.constant 5 : index
    %c0_148 = arith.constant 0 : index
    %c0_149 = arith.constant 0 : index
    %179 = vector.load %arg4[%c4_146, %c5_147, %c0_148, %c0_149] : memref<7x7x8x128xf32, #tpu.memory_space<vmem>>, vector<1x1x8x128xf32>
    %180 = vector.shape_cast %179 : vector<1x1x8x128xf32> to vector<8x128xf32>
    %181 = vector.extract_strided_slice %153 {offsets = [0, 40], sizes = [8, 128], strides = [1, 1]} : vector<8x176xf32> to vector<8x128xf32>
    %182 = arith.mulf %181, %180 : vector<8x128xf32>
    %183 = arith.addf %173, %182 : vector<8x128xf32>
    %c4_150 = arith.constant 4 : index
    %c6_151 = arith.constant 6 : index
    %c0_152 = arith.constant 0 : index
    %c0_153 = arith.constant 0 : index
    %184 = vector.load %arg4[%c4_150, %c6_151, %c0_152, %c0_153] : memref<7x7x8x128xf32, #tpu.memory_space<vmem>>, vector<1x1x8x128xf32>
    %185 = vector.shape_cast %184 : vector<1x1x8x128xf32> to vector<8x128xf32>
    %186 = vector.extract_strided_slice %153 {offsets = [0, 48], sizes = [8, 128], strides = [1, 1]} : vector<8x176xf32> to vector<8x128xf32>
    %187 = arith.mulf %186, %185 : vector<8x128xf32>
    %188 = arith.addf %178, %187 : vector<8x128xf32>
    %c5_154 = arith.constant 5 : index
    %c0_155 = arith.constant 0 : index
    %189 = vector.load %arg6[%c5_154, %c0_155] : memref<16x176xf32, #tpu.memory_space<vmem>>, vector<8x176xf32>
    %c5_156 = arith.constant 5 : index
    %c0_157 = arith.constant 0 : index
    %c0_158 = arith.constant 0 : index
    %c0_159 = arith.constant 0 : index
    %190 = vector.load %arg4[%c5_156, %c0_157, %c0_158, %c0_159] : memref<7x7x8x128xf32, #tpu.memory_space<vmem>>, vector<1x1x8x128xf32>
    %191 = vector.shape_cast %190 : vector<1x1x8x128xf32> to vector<8x128xf32>
    %192 = vector.extract_strided_slice %189 {offsets = [0, 0], sizes = [8, 128], strides = [1, 1]} : vector<8x176xf32> to vector<8x128xf32>
    %193 = arith.mulf %192, %191 : vector<8x128xf32>
    %194 = arith.addf %183, %193 : vector<8x128xf32>
    %c5_160 = arith.constant 5 : index
    %c1_161 = arith.constant 1 : index
    %c0_162 = arith.constant 0 : index
    %c0_163 = arith.constant 0 : index
    %195 = vector.load %arg4[%c5_160, %c1_161, %c0_162, %c0_163] : memref<7x7x8x128xf32, #tpu.memory_space<vmem>>, vector<1x1x8x128xf32>
    %196 = vector.shape_cast %195 : vector<1x1x8x128xf32> to vector<8x128xf32>
    %197 = vector.extract_strided_slice %189 {offsets = [0, 8], sizes = [8, 128], strides = [1, 1]} : vector<8x176xf32> to vector<8x128xf32>
    %198 = arith.mulf %197, %196 : vector<8x128xf32>
    %199 = arith.addf %188, %198 : vector<8x128xf32>
    %c5_164 = arith.constant 5 : index
    %c2_165 = arith.constant 2 : index
    %c0_166 = arith.constant 0 : index
    %c0_167 = arith.constant 0 : index
    %200 = vector.load %arg4[%c5_164, %c2_165, %c0_166, %c0_167] : memref<7x7x8x128xf32, #tpu.memory_space<vmem>>, vector<1x1x8x128xf32>
    %201 = vector.shape_cast %200 : vector<1x1x8x128xf32> to vector<8x128xf32>
    %202 = vector.extract_strided_slice %189 {offsets = [0, 16], sizes = [8, 128], strides = [1, 1]} : vector<8x176xf32> to vector<8x128xf32>
    %203 = arith.mulf %202, %201 : vector<8x128xf32>
    %204 = arith.addf %194, %203 : vector<8x128xf32>
    %c5_168 = arith.constant 5 : index
    %c3_169 = arith.constant 3 : index
    %c0_170 = arith.constant 0 : index
    %c0_171 = arith.constant 0 : index
    %205 = vector.load %arg4[%c5_168, %c3_169, %c0_170, %c0_171] : memref<7x7x8x128xf32, #tpu.memory_space<vmem>>, vector<1x1x8x128xf32>
    %206 = vector.shape_cast %205 : vector<1x1x8x128xf32> to vector<8x128xf32>
    %207 = vector.extract_strided_slice %189 {offsets = [0, 24], sizes = [8, 128], strides = [1, 1]} : vector<8x176xf32> to vector<8x128xf32>
    %208 = arith.mulf %207, %206 : vector<8x128xf32>
    %209 = arith.addf %199, %208 : vector<8x128xf32>
    %c5_172 = arith.constant 5 : index
    %c4_173 = arith.constant 4 : index
    %c0_174 = arith.constant 0 : index
    %c0_175 = arith.constant 0 : index
    %210 = vector.load %arg4[%c5_172, %c4_173, %c0_174, %c0_175] : memref<7x7x8x128xf32, #tpu.memory_space<vmem>>, vector<1x1x8x128xf32>
    %211 = vector.shape_cast %210 : vector<1x1x8x128xf32> to vector<8x128xf32>
    %212 = vector.extract_strided_slice %189 {offsets = [0, 32], sizes = [8, 128], strides = [1, 1]} : vector<8x176xf32> to vector<8x128xf32>
    %213 = arith.mulf %212, %211 : vector<8x128xf32>
    %214 = arith.addf %204, %213 : vector<8x128xf32>
    %c5_176 = arith.constant 5 : index
    %c5_177 = arith.constant 5 : index
    %c0_178 = arith.constant 0 : index
    %c0_179 = arith.constant 0 : index
    %215 = vector.load %arg4[%c5_176, %c5_177, %c0_178, %c0_179] : memref<7x7x8x128xf32, #tpu.memory_space<vmem>>, vector<1x1x8x128xf32>
    %216 = vector.shape_cast %215 : vector<1x1x8x128xf32> to vector<8x128xf32>
    %217 = vector.extract_strided_slice %189 {offsets = [0, 40], sizes = [8, 128], strides = [1, 1]} : vector<8x176xf32> to vector<8x128xf32>
    %218 = arith.mulf %217, %216 : vector<8x128xf32>
    %219 = arith.addf %209, %218 : vector<8x128xf32>
    %c5_180 = arith.constant 5 : index
    %c6_181 = arith.constant 6 : index
    %c0_182 = arith.constant 0 : index
    %c0_183 = arith.constant 0 : index
    %220 = vector.load %arg4[%c5_180, %c6_181, %c0_182, %c0_183] : memref<7x7x8x128xf32, #tpu.memory_space<vmem>>, vector<1x1x8x128xf32>
    %221 = vector.shape_cast %220 : vector<1x1x8x128xf32> to vector<8x128xf32>
    %222 = vector.extract_strided_slice %189 {offsets = [0, 48], sizes = [8, 128], strides = [1, 1]} : vector<8x176xf32> to vector<8x128xf32>
    %223 = arith.mulf %222, %221 : vector<8x128xf32>
    %224 = arith.addf %214, %223 : vector<8x128xf32>
    %c6_184 = arith.constant 6 : index
    %c0_185 = arith.constant 0 : index
    %225 = vector.load %arg6[%c6_184, %c0_185] : memref<16x176xf32, #tpu.memory_space<vmem>>, vector<8x176xf32>
    %c6_186 = arith.constant 6 : index
    %c0_187 = arith.constant 0 : index
    %c0_188 = arith.constant 0 : index
    %c0_189 = arith.constant 0 : index
    %226 = vector.load %arg4[%c6_186, %c0_187, %c0_188, %c0_189] : memref<7x7x8x128xf32, #tpu.memory_space<vmem>>, vector<1x1x8x128xf32>
    %227 = vector.shape_cast %226 : vector<1x1x8x128xf32> to vector<8x128xf32>
    %228 = vector.extract_strided_slice %225 {offsets = [0, 0], sizes = [8, 128], strides = [1, 1]} : vector<8x176xf32> to vector<8x128xf32>
    %229 = arith.mulf %228, %227 : vector<8x128xf32>
    %230 = arith.addf %219, %229 : vector<8x128xf32>
    %c6_190 = arith.constant 6 : index
    %c1_191 = arith.constant 1 : index
    %c0_192 = arith.constant 0 : index
    %c0_193 = arith.constant 0 : index
    %231 = vector.load %arg4[%c6_190, %c1_191, %c0_192, %c0_193] : memref<7x7x8x128xf32, #tpu.memory_space<vmem>>, vector<1x1x8x128xf32>
    %232 = vector.shape_cast %231 : vector<1x1x8x128xf32> to vector<8x128xf32>
    %233 = vector.extract_strided_slice %225 {offsets = [0, 8], sizes = [8, 128], strides = [1, 1]} : vector<8x176xf32> to vector<8x128xf32>
    %234 = arith.mulf %233, %232 : vector<8x128xf32>
    %235 = arith.addf %224, %234 : vector<8x128xf32>
    %c6_194 = arith.constant 6 : index
    %c2_195 = arith.constant 2 : index
    %c0_196 = arith.constant 0 : index
    %c0_197 = arith.constant 0 : index
    %236 = vector.load %arg4[%c6_194, %c2_195, %c0_196, %c0_197] : memref<7x7x8x128xf32, #tpu.memory_space<vmem>>, vector<1x1x8x128xf32>
    %237 = vector.shape_cast %236 : vector<1x1x8x128xf32> to vector<8x128xf32>
    %238 = vector.extract_strided_slice %225 {offsets = [0, 16], sizes = [8, 128], strides = [1, 1]} : vector<8x176xf32> to vector<8x128xf32>
    %239 = arith.mulf %238, %237 : vector<8x128xf32>
    %240 = arith.addf %230, %239 : vector<8x128xf32>
    %c6_198 = arith.constant 6 : index
    %c3_199 = arith.constant 3 : index
    %c0_200 = arith.constant 0 : index
    %c0_201 = arith.constant 0 : index
    %241 = vector.load %arg4[%c6_198, %c3_199, %c0_200, %c0_201] : memref<7x7x8x128xf32, #tpu.memory_space<vmem>>, vector<1x1x8x128xf32>
    %242 = vector.shape_cast %241 : vector<1x1x8x128xf32> to vector<8x128xf32>
    %243 = vector.extract_strided_slice %225 {offsets = [0, 24], sizes = [8, 128], strides = [1, 1]} : vector<8x176xf32> to vector<8x128xf32>
    %244 = arith.mulf %243, %242 : vector<8x128xf32>
    %245 = arith.addf %235, %244 : vector<8x128xf32>
    %c6_202 = arith.constant 6 : index
    %c4_203 = arith.constant 4 : index
    %c0_204 = arith.constant 0 : index
    %c0_205 = arith.constant 0 : index
    %246 = vector.load %arg4[%c6_202, %c4_203, %c0_204, %c0_205] : memref<7x7x8x128xf32, #tpu.memory_space<vmem>>, vector<1x1x8x128xf32>
    %247 = vector.shape_cast %246 : vector<1x1x8x128xf32> to vector<8x128xf32>
    %248 = vector.extract_strided_slice %225 {offsets = [0, 32], sizes = [8, 128], strides = [1, 1]} : vector<8x176xf32> to vector<8x128xf32>
    %249 = arith.mulf %248, %247 : vector<8x128xf32>
    %250 = arith.addf %240, %249 : vector<8x128xf32>
    %c6_206 = arith.constant 6 : index
    %c5_207 = arith.constant 5 : index
    %c0_208 = arith.constant 0 : index
    %c0_209 = arith.constant 0 : index
    %251 = vector.load %arg4[%c6_206, %c5_207, %c0_208, %c0_209] : memref<7x7x8x128xf32, #tpu.memory_space<vmem>>, vector<1x1x8x128xf32>
    %252 = vector.shape_cast %251 : vector<1x1x8x128xf32> to vector<8x128xf32>
    %253 = vector.extract_strided_slice %225 {offsets = [0, 40], sizes = [8, 128], strides = [1, 1]} : vector<8x176xf32> to vector<8x128xf32>
    %254 = arith.mulf %253, %252 : vector<8x128xf32>
    %255 = arith.addf %245, %254 : vector<8x128xf32>
    %c6_210 = arith.constant 6 : index
    %c6_211 = arith.constant 6 : index
    %c0_212 = arith.constant 0 : index
    %c0_213 = arith.constant 0 : index
    %256 = vector.load %arg4[%c6_210, %c6_211, %c0_212, %c0_213] : memref<7x7x8x128xf32, #tpu.memory_space<vmem>>, vector<1x1x8x128xf32>
    %257 = vector.shape_cast %256 : vector<1x1x8x128xf32> to vector<8x128xf32>
    %258 = vector.extract_strided_slice %225 {offsets = [0, 48], sizes = [8, 128], strides = [1, 1]} : vector<8x176xf32> to vector<8x128xf32>
    %259 = arith.mulf %258, %257 : vector<8x128xf32>
    %260 = arith.addf %250, %259 : vector<8x128xf32>
    %261 = arith.addf %260, %255 : vector<8x128xf32>
    %c0_214 = arith.constant 0 : index
    %c0_215 = arith.constant 0 : index
    %c0_216 = arith.constant 0 : index
    %262 = vector.load %arg5[%c0_214, %c0_215, %c0_216] : memref<1x8x128xf32, #tpu.memory_space<vmem>>, vector<1x8x128xf32>
    %263 = vector.shape_cast %262 : vector<1x8x128xf32> to vector<8x128xf32>
    %264 = vector.shape_cast %261 : vector<8x128xf32> to vector<1x8x128xf32>
    tpu.vector_store %arg5[%c0_214, %c0_215, %c0_216], %264 {strides = array<i32>} : memref<1x8x128xf32, #tpu.memory_space<vmem>>, vector<1x8x128xf32>,
    return
  }
  func.func @transform_0(%arg0: i32, %arg1: i32) -> (i32, i32, i32) {
    %c0_i32 = arith.constant 0 : i32
    %c0_i32_0 = arith.constant 0 : i32
    return %arg0, %arg1, %c0_i32 : i32, i32, i32
  }
  func.func @transform_1(%arg0: i32, %arg1: i32) -> (i32, i32, i32) {
    %c1_i32 = arith.constant 1 : i32
    %0 = arith.addi %arg1, %c1_i32 : i32
    %c1_i32_0 = arith.constant 1 : i32
    %1 = arith.muli %0, %c1_i32_0 : i32
    %c0_i32 = arith.constant 0 : i32
    %c0_i32_1 = arith.constant 0 : i32
    return %arg0, %1, %c0_i32 : i32, i32, i32
  }
  func.func @transform_2(%arg0: i32, %arg1: i32) -> (i32, i32, i32, i32) {
    %c0_i32 = arith.constant 0 : i32
    %c0_i32_0 = arith.constant 0 : i32
    %c0_i32_1 = arith.constant 0 : i32
    %c0_i32_2 = arith.constant 0 : i32
    %c0_i32_3 = arith.constant 0 : i32
    return %c0_i32, %c0_i32_0, %c0_i32_1, %c0_i32_2 : i32, i32, i32, i32
  }
  func.func @transform_3(%arg0: i32, %arg1: i32) -> (i32, i32, i32) {
    %c0_i32 = arith.constant 0 : i32
    %c0_i32_0 = arith.constant 0 : i32
    return %arg0, %arg1, %c0_i32 : i32, i32, i32
  }
}

</mosaic_0001>

<llo_original>
// kernel: tpu_custom_call.1
$region0: #{tpu_custom_call.1}
  #allocation0 [shape = 'u32[]', space=smem, size = 0x4, offset = 0x4, fixed_abs, tag = 'smem constant byte address 0x4 - core index']
  #allocation1 [shape = 'u32[144,128]{1,0:T(1,128)}', space=vmem, size = 0x12000, scoped, tag = 'internal scratch']
  #allocation2 [shape = 'f32[16,176]{1,0:T(8,128)}', space=vmem, size = 0x4000, scoped, tag = 'scratch operand']
  %s0 = inlined_call_operand.hbm [shape: f32[2,24,176], index: 0, kind: input, shape index: {}]
  %s1 = inlined_call_operand.hbm [shape: f32[2,24,176], index: 1, kind: input, shape index: {}]
  %s2 = inlined_call_operand.hbm [shape: f32[7,7,8,128], index: 2, kind: input, shape index: {}]
  %s3 = inlined_call_operand.hbm [shape: f32[2,16,128], index: 3, kind: output, shape index: {}]
  %s4 = sld [smem:[#allocation0]]
  $region57: #{tpu_custom_call.1} parent=0
    _
  %s6 = ssub.s32 1, %s4
  %s7 = scalar_select 0, %s6, %s4
  $region1: #{tpu_custom_call.1} parent=0
    #allocation3 [shape = 'u8[16384]{0}', space=vmem, size = 0x4000, scoped, tag = 'input window, operand 0']
    #allocation4 [shape = 's32[2]{0}', space=sflag, size = 0x8, scoped, tag = 'scoped memory for tpu_custom_call.1']
    #allocation5 [shape = 's32[2]{0}', space=sflag, size = 0x8, scoped, tag = 'scoped memory for tpu_custom_call.1']
    #allocation6 [shape = 'u8[16384]{0}', space=vmem, size = 0x4000, scoped, tag = 'input window, operand 1']
    #allocation7 [shape = 's32[2]{0}', space=sflag, size = 0x8, scoped, tag = 'scoped memory for tpu_custom_call.1']
    #allocation8 [shape = 'u8[200704]{0}', space=vmem, size = 0x31000, scoped, tag = 'input window, operand 2, single buffered']
    #allocation9 [shape = 'u8[8192]{0}', space=vmem, size = 0x2000, scoped, tag = 'output window, operand 0']
    %8 = vsyncpa [#allocation4], 0
    %s9 = scalar_lea.sflag [#allocation4], 1
    %10 = vsyncpa %s9, 0
    %11 = vsyncpa [#allocation7], 0
    %s12 = scalar_lea.sflag [#allocation7], 1
    %13 = vsyncpa %s12, 0
    %14 = vsyncpa [#allocation5], 0
    %s15 = scalar_lea.sflag [#allocation5], 1
    %16 = vsyncpa %s15, 0
    loop: start=0, step=1, limit=6
    $region2: #{tpu_custom_call.1} parent=1 // loop_pre_header
      _
    $region3: #{tpu_custom_call.1} parent=1 // loop_header
      %s18 = sphi 0, %s22
      %p19 = scmp.ge.s32.totalorder %s18, 6
      %s25 = sphi 0, %s37
      %s26 = sphi 0, %s33
      %s27 = sphi 0, %s25
      %s28 = sphi 0, %s26
      %s29 = sphi 0, %s27
      %s30 = sphi 0, %s28
      %s42 = sphi 0, %s44
      %s45 = sphi 0, %s42
      %s46 = sphi 0, %s45
      %s62 = sphi 0, %s46
      %s72 = sphi 0, %s74
      %s75 = sphi 0, %s72
      %s76 = sphi 0, %s75
      %s92 = sphi 0, %s76
      %s96 = sphi 0, %s96
      %s98 = sphi 0, %s96
      %s99 = sphi 0, %s98
      %s113 = sphi 0, %s99
      %s121 = sphi 0, %s123
      %s124 = sphi 0, %s121
      %s125 = sphi 0, %s124
      %s141 = sphi 0, %s125
    $region4: #{tpu_custom_call.1} parent=1 // loop_header_branch
      %21 = sbr.rel (%p19) target = $region8
    $region5: #{tpu_custom_call.1} parent=1 // loop_body
      %s23 = ssub.s32 %s18, 1
      %s24 = ssub.s32 %s18, 2
      %s31 = sadd.s32 1, %s26
      %p32 = scmp.ge.s32.totalorder %s31, 2
      %s33 = scalar_select %p32, 0, %s31
      %s34 = sadd.s32 1, %s25
      %s35 = scalar_select %p32, %s34, %s25
      %p36 = scmp.ge.s32.totalorder %s35, 2
      %s37 = scalar_select %p36, 0, %s35
      %s38 = ssub.s32 %s25, %s37
      %s39 = ssub.s32 %s26, %s33
      %s40 = sor.u32 %s38, %s39
      %p41 = scmp.eq.s32.totalorder %s40, 0
      %s43 = sadd.s32 %s42, 1
      %s44 = scalar_select %p41, %s42, %s43
      %p47 = pneg %p41
      %p48 = scmp.eq.s32.totalorder %s18, 3
      %p49 = por %p47, %p48
      %p50 = scmp.ne.s32.totalorder %s42, %s45
      %p51 = scmp.eq.s32.totalorder %s18, 0
      %p52 = por %p50, %p51
      %p53 = scmp.ne.s32.totalorder %s42, %s45
      %p54 = scmp.eq.s32.totalorder %s23, 3
      %p55 = por %p53, %p54
      %p56 = scmp.ne.s32.totalorder %s45, %s46
      %p57 = scmp.eq.s32.totalorder %s23, 0
      %p58 = por %p56, %p57
      %p59 = scmp.ne.s32.totalorder %s45, %s46
      %p60 = scmp.eq.s32.totalorder %s24, 3
      %p61 = por %p59, %p60
      %p63 = scmp.ne.s32.totalorder %s46, %s62
      %p64 = scmp.eq.s32.totalorder %s24, 0
      %p65 = por %p63, %p64
      %s66 = sadd.s32 %s26, 1
      %s67 = sadd.s32 %s33, 1
      %s68 = ssub.s32 %s25, %s37
      %s69 = ssub.s32 %s66, %s67
      %s70 = sor.u32 %s68, %s69
      %p71 = scmp.eq.s32.totalorder %s70, 0
      %s73 = sadd.s32 %s72, 1
      %s74 = scalar_select %p71, %s72, %s73
      %p77 = pneg %p71
      %p78 = scmp.eq.s32.totalorder %s18, 3
      %p79 = por %p77, %p78
      %p80 = scmp.ne.s32.totalorder %s72, %s75
      %p81 = scmp.eq.s32.totalorder %s18, 0
      %p82 = por %p80, %p81
      %p83 = scmp.ne.s32.totalorder %s72, %s75
      %p84 = scmp.eq.s32.totalorder %s23, 3
      %p85 = por %p83, %p84
      %p86 = scmp.ne.s32.totalorder %s75, %s76
      %p87 = scmp.eq.s32.totalorder %s23, 0
      %p88 = por %p86, %p87
      %p89 = scmp.ne.s32.totalorder %s75, %s76
      %p90 = scmp.eq.s32.totalorder %s24, 3
      %p91 = por %p89, %p90
      %p93 = scmp.ne.s32.totalorder %s76, %s92
      %p94 = scmp.eq.s32.totalorder %s24, 0
      %p95 = por %p93, %p94
      %s97 = sadd.s32 %s96, 1
      %p100 = scmp.eq.s32.totalorder %s18, 3
      %p101 = scmp.ne.s32.totalorder %s96, %s98
      %p102 = scmp.eq.s32.totalorder %s18, 0
      %p103 = por %p101, %p102
      %p104 = scmp.ne.s32.totalorder %s96, %s98
      %p105 = scmp.eq.s32.totalorder %s23, 3
      %p106 = por %p104, %p105
      %p107 = scmp.ne.s32.totalorder %s98, %s99
      %p108 = scmp.eq.s32.totalorder %s23, 0
      %p109 = por %p107, %p108
      %p110 = scmp.ne.s32.totalorder %s98, %s99
      %p111 = scmp.eq.s32.totalorder %s24, 3
      %p112 = por %p110, %p111
      %p114 = scmp.ne.s32.totalorder %s99, %s113
      %p115 = scmp.eq.s32.totalorder %s24, 0
      %p116 = por %p114, %p115
      %s117 = ssub.s32 %s25, %s37
      %s118 = ssub.s32 %s26, %s33
      %s119 = sor.u32 %s117, %s118
      %p120 = scmp.eq.s32.totalorder %s119, 0
      %s122 = sadd.s32 %s121, 1
      %s123 = scalar_select %p120, %s121, %s122
      %p126 = pneg %p120
      %p127 = scmp.eq.s32.totalorder %s18, 3
      %p128 = por %p126, %p127
      %p129 = scmp.ne.s32.totalorder %s121, %s124
      %p130 = scmp.eq.s32.totalorder %s18, 0
      %p131 = por %p129, %p130
      %p132 = scmp.ne.s32.totalorder %s121, %s124
      %p133 = scmp.eq.s32.totalorder %s23, 3
      %p134 = por %p132, %p133
      %p135 = scmp.ne.s32.totalorder %s124, %s125
      %p136 = scmp.eq.s32.totalorder %s23, 0
      %p137 = por %p135, %p136
      %p138 = scmp.ne.s32.totalorder %s124, %s125
      %p139 = scmp.eq.s32.totalorder %s24, 3
      %p140 = por %p138, %p139
      %p142 = scmp.ne.s32.totalorder %s125, %s141
      %p143 = scmp.eq.s32.totalorder %s24, 0
      %p144 = por %p142, %p143
      %p145 = scmp.le.s32.totalorder 1, %s18
      %p146 = scmp.lt.s32.totalorder %s18, 5
      %p147 = pnand %p145, %p146
      %p148 = pneg %p147
      // Predicated region
      $region9: #{tpu_custom_call.1} parent=5 // pred_check
        _
      $region10: #{tpu_custom_call.1} parent=5 // pred_check_branch
        %150 = sbr.rel (%p147) target = $region12
      $region11: #{tpu_custom_call.1} parent=5 // pred_region
        %s151 = ssub.s32 %s18, 1
        // Predicated region
        $region13: #{tpu_custom_call.1} parent=11 // pred_check
          %p152 = pneg %p109
        $region14: #{tpu_custom_call.1} parent=11 // pred_check_branch
          %154 = sbr.rel (%p152) target = $region16
        $region15: #{tpu_custom_call.1} parent=11 // pred_region
          %s156 = ssub.s32 6272, 6272
          %157 = vsyncadd [#allocation7], %s156
          %s158 = sshll.u32 [#allocation8], 4
          %s159 = int_to_ptr.vmem [resolvable:$true] %s158
          %164 = dma.hbm_to_vmem [thread:$0]  %s2, 6272, %s159, [#allocation7], 128, 128, 8
        $region16: #{tpu_custom_call.1} parent=11 // pred_fallthru
          _
      $region12: #{tpu_custom_call.1} parent=5 // pred_fallthru
        _
      %p165 = scmp.lt.s32.totalorder %s18, 4
      // Predicated region
      $region17: #{tpu_custom_call.1} parent=5 // pred_check
        %p166 = pneg %p165
      $region18: #{tpu_custom_call.1} parent=5 // pred_check_branch
        %168 = sbr.rel (%p166) target = $region20
      $region19: #{tpu_custom_call.1} parent=5 // pred_region
        // Predicated region
        $region21: #{tpu_custom_call.1} parent=19 // pred_check
          %p169 = pneg %p52
        $region22: #{tpu_custom_call.1} parent=19 // pred_check_branch
          %171 = sbr.rel (%p169) target = $region24
        $region23: #{tpu_custom_call.1} parent=19 // pred_region
          %s172 = sand.u32 %s42, 1
          %s173 = scalar_lea.sflag [#allocation4], %s172
          %s174 = sand.u32 %s42, 1
          %s175 = smul.addr %s174, 16
          %s176 = scalar_lea.vmem [#allocation3], %s175
          %s178 = ssub.s32 256, 256
          %179 = vsyncadd %s173, %s178
          %s180 = smul.addr %s26, 2
          %s181 = smul.addr %s25, 6
          %s182 = sadd.s32 %s180, %s181
          %s183 = smul.addr %s182, 128
          %s184 = scalar_lea.hbm %s0, %s183
          %s186 = sshll.u32 %s176, 4
          %s187 = int_to_ptr.vmem [resolvable:$true] %s186
          %189 = dma.hbm_to_vmem [thread:$0]  %s184, 256, %s187, %s173
        $region24: #{tpu_custom_call.1} parent=19 // pred_fallthru
          _
        // Predicated region
        $region25: #{tpu_custom_call.1} parent=19 // pred_check
          %p190 = pneg %p82
        $region26: #{tpu_custom_call.1} parent=19 // pred_check_branch
          %192 = sbr.rel (%p190) target = $region28
        $region27: #{tpu_custom_call.1} parent=19 // pred_region
          %s193 = sand.u32 %s18, 1
          %s194 = scalar_lea.sflag [#allocation7], %s193
          %s195 = sand.u32 %s72, 1
          %s196 = smul.addr %s195, 16
          %s197 = scalar_lea.vmem [#allocation6], %s196
          %s198 = sadd.s32 %s26, 1
          %s200 = ssub.s32 256, 256
          %201 = vsyncadd %s194, %s200
          %s202 = smul.addr %s198, 2
          %s203 = smul.addr %s25, 6
          %s204 = sadd.s32 %s202, %s203
          %s205 = smul.addr %s204, 128
          %s206 = scalar_lea.hbm %s1, %s205
          %s208 = sshll.u32 %s197, 4
          %s209 = int_to_ptr.vmem [resolvable:$true] %s208
          %211 = dma.hbm_to_vmem [thread:$0]  %s206, 256, %s209, %s194
        $region28: #{tpu_custom_call.1} parent=19 // pred_fallthru
          _
      $region20: #{tpu_custom_call.1} parent=5 // pred_fallthru
        _
      %p212 = scmp.le.s32.totalorder 1, %s18
      %p213 = scmp.lt.s32.totalorder %s18, 5
      %p214 = pnand %p212, %p213
      %p215 = pneg %p214
      // Predicated region
      $region29: #{tpu_custom_call.1} parent=5 // pred_check
        _
      $region30: #{tpu_custom_call.1} parent=5 // pred_check_branch
        %217 = sbr.rel (%p214) target = $region32
      $region31: #{tpu_custom_call.1} parent=5 // pred_region
        %s218 = ssub.s32 %s18, 1
        %s219 = sand.u32 %s45, 1
        %s220 = scalar_lea.sflag [#allocation4], %s219
        %s221 = sand.u32 %s45, 1
        %s222 = smul.addr %s221, 16
        %s223 = scalar_lea.vmem [#allocation3], %s222
        // Predicated region
        $region33: #{tpu_custom_call.1} parent=31 // pred_check
          %p224 = pneg %p58
        $region34: #{tpu_custom_call.1} parent=31 // pred_check_branch
          %226 = sbr.rel (%p224) target = $region36
        $region35: #{tpu_custom_call.1} parent=31 // pred_region
          %227 = dma.done %s220, 256
        $region36: #{tpu_custom_call.1} parent=31 // pred_fallthru
          _
        %s228 = sand.u32 %s23, 1
        %s229 = scalar_lea.sflag [#allocation7], %s228
        %s230 = sand.u32 %s75, 1
        %s231 = smul.addr %s230, 16
        %s232 = scalar_lea.vmem [#allocation6], %s231
        // Predicated region
        $region37: #{tpu_custom_call.1} parent=31 // pred_check
          %p233 = pneg %p88
        $region38: #{tpu_custom_call.1} parent=31 // pred_check_branch
          %235 = sbr.rel (%p233) target = $region40
        $region39: #{tpu_custom_call.1} parent=31 // pred_region
          %236 = dma.done %s229, 256
        $region40: #{tpu_custom_call.1} parent=31 // pred_fallthru
          _
        // Predicated region
        $region41: #{tpu_custom_call.1} parent=31 // pred_check
          %p237 = pneg %p109
        $region42: #{tpu_custom_call.1} parent=31 // pred_check_branch
          %239 = sbr.rel (%p237) target = $region44
        $region43: #{tpu_custom_call.1} parent=31 // pred_region
          %240 = dma.done [#allocation7], 6272
        $region44: #{tpu_custom_call.1} parent=31 // pred_fallthru
          _
        %s241 = sand.u32 %s45, 1
        %s242 = scalar_lea.sflag [#allocation4], %s241
        %s243 = sand.u32 %s45, 1
        %s244 = smul.addr %s243, 16
        %s245 = scalar_lea.vmem [#allocation3], %s244
        %p246 = pneg %p58
        %p247 = pneg %p55
        %s248 = sand.u32 %s23, 1
        %s249 = scalar_lea.sflag [#allocation7], %s248
        %s250 = sand.u32 %s75, 1
        %s251 = smul.addr %s250, 16
        %s252 = scalar_lea.vmem [#allocation6], %s251
        %p253 = pneg %p88
        %p254 = pneg %p85
        %p255 = pneg %p109
        %p256 = pneg %p106
        %p257 = pneg %p137
        %p258 = pneg %p134
        %s259 = sand.u32 %s124, 1
        %s260 = scalar_lea.sflag [#allocation5], %s259
        %s261 = sand.u32 %s124, 1
        %s262 = smul.addr %s261, 8
        %s263 = scalar_lea.vmem [#allocation9], %s262
        %s264 = sadd.s32 %s28, 1
        %v265 = vld [vmem:[%s223] sm:$0xff]
        %v266 = vld [vmem:[%s223 + $0x8] sm:$0xff]
        %267 = vst [vmem:[#allocation2] sm:$0xff] %v265
        %vm268 = vcmask 392192
        %269 = vst.msk [vmem:[#allocation2 + $0x8] sm:$0xff] %vm268, %v266
        %v270 = vld [vmem:[%s232] sm:$0xff]
        %v271 = vld [vmem:[%s232 + $0x8] sm:$0xff]
        %272 = vst [vmem:[#allocation2 + $0x10] sm:$0xff] %v270
        %273 = vst.msk [vmem:[#allocation2 + $0x18] sm:$0xff] %vm268, %v271
        %v274 = vld [vmem:[%s223] sm:$0xff]
        %v275 = vld [vmem:[%s223 + $0x8] sm:$0xff]
        %v276 = vld [vmem:[#allocation8] sm:$0xff]
        %v277 = vmul.f32 %v274, %v276
        %v278 = vadd.f32 %v277, 0.0
        %s279 = scalar_lea.vmem [#allocation8], 8
        %v280 = vld [vmem:[%s279] sm:$0xff]
        %282 = vrot.lane.b32.xlu0 %v280, 8
        %v283 = vpop.permute.xlu0 %282
        %v285 = vmul.f32 %v274, %v283
        %v286 = vmul.f32 %v275, %v283
        %v287 = vadd.f32 %v285, 0.0
        %v288 = vadd.f32 %v286, 0.0
        %s289 = scalar_lea.vmem [#allocation8], 16
        %v290 = vld [vmem:[%s289] sm:$0xff]
        %292 = vrot.lane.b32.xlu0 %v290, 16
        %v293 = vpop.permute.xlu0 %292
        %v295 = vmul.f32 %v274, %v293
        %v296 = vmul.f32 %v275, %v293
        %299 = vrot.lane.b32.xlu0 %v295, 112
        %v300 = vpop.permute.xlu0 %299
        %301 = vrot.lane.b32.xlu0 %v296, 112
        %v302 = vpop.permute.xlu0 %301
        %vm303 = vcmask 916480
        %v304 = vsel %vm303, %v300, %v302
        %v306 = vadd.f32 %v278, %v304
        %s307 = scalar_lea.vmem [#allocation8], 24
        %v308 = vld [vmem:[%s307] sm:$0xff]
        %310 = vrot.lane.b32.xlu0 %v308, 24
        %v311 = vpop.permute.xlu0 %310
        %v313 = vmul.f32 %v274, %v311
        %v314 = vmul.f32 %v275, %v311
        %317 = vrot.lane.b32.xlu0 %v313, 112
        %v318 = vpop.permute.xlu0 %317
        %319 = vrot.lane.b32.xlu0 %v314, 112
        %v320 = vpop.permute.xlu0 %319
        %v321 = vsel %vm303, %v318, %v320
        %v324 = vadd.f32 %v287, %v321
        %v325 = vadd.f32 %v288, %v320
        %s326 = scalar_lea.vmem [#allocation8], 32
        %v327 = vld [vmem:[%s326] sm:$0xff]
        %329 = vrot.lane.b32.xlu0 %v327, 32
        %v330 = vpop.permute.xlu0 %329
        %v332 = vmul.f32 %v274, %v330
        %v333 = vmul.f32 %v275, %v330
        %336 = vrot.lane.b32.xlu0 %v332, 96
        %v337 = vpop.permute.xlu0 %336
        %338 = vrot.lane.b32.xlu0 %v333, 96
        %v339 = vpop.permute.xlu0 %338
        %vm340 = vcmask 785408
        %v341 = vsel %vm340, %v337, %v339
        %v343 = vadd.f32 %v306, %v341
        %s344 = scalar_lea.vmem [#allocation8], 40
        %v345 = vld [vmem:[%s344] sm:$0xff]
        %347 = vrot.lane.b32.xlu0 %v345, 40
        %v348 = vpop.permute.xlu0 %347
        %v350 = vmul.f32 %v274, %v348
        %v351 = vmul.f32 %v275, %v348
        %354 = vrot.lane.b32.xlu0 %v350, 96
        %v355 = vpop.permute.xlu0 %354
        %356 = vrot.lane.b32.xlu0 %v351, 96
        %v357 = vpop.permute.xlu0 %356
        %v358 = vsel %vm340, %v355, %v357
        %v361 = vadd.f32 %v324, %v358
        %v362 = vadd.f32 %v325, %v357
        %s363 = scalar_lea.vmem [#allocation8], 48
        %v364 = vld [vmem:[%s363] sm:$0xff]
        %366 = vrot.lane.b32.xlu0 %v364, 48
        %v367 = vpop.permute.xlu0 %366
        %v369 = vmul.f32 %v274, %v367
        %v370 = vmul.f32 %v275, %v367
        %373 = vrot.lane.b32.xlu0 %v369, 80
        %v374 = vpop.permute.xlu0 %373
        %375 = vrot.lane.b32.xlu0 %v370, 80
        %v376 = vpop.permute.xlu0 %375
        %vm377 = vcmask 654336
        %v378 = vsel %vm377, %v374, %v376
        %v380 = vadd.f32 %v343, %v378
        %v381 = vld [vmem:[#allocation2] sm:$0xfe]
        %v382 = vld [vmem:[#allocation2 + $0x8] sm:$0xfe]
        %v383 = vld [vmem:[#allocation2 + $0x10] sm:$0x1]
        %v384 = vld [vmem:[#allocation2 + $0x18] sm:$0x1]
        %s385 = scalar_lea.vmem [#allocation8], 56
        %v386 = vld [vmem:[%s385] sm:$0xff]
        %v388 = vrot.slane %v386, 7
        %v390 = vmul.f32 %v381, %v388
        %v391 = vmul.f32 %v383, %v388
        %vm394 = vcmask 1046528
        %v395 = vrot.slane %v390, 1
        %v396 = vrot.slane %v391, 1
        %v397 = vsel %vm394, %v395, %v396
        %398 = vrot.lane.b32.xlu0 %v397, 8
        %v399 = vpop.permute.xlu0 %398
        %v401 = vadd.f32 %v361, %v399
        %v402 = vadd.f32 %v362, %v399
        %s403 = scalar_lea.vmem [#allocation8], 64
        %v404 = vld [vmem:[%s403] sm:$0xff]
        %v406 = vrot.slane %v404, 7
        %407 = vrot.lane.b32.xlu0 %v406, 8
        %v408 = vpop.permute.xlu0 %407
        %v410 = vmul.f32 %v381, %v408
        %v411 = vmul.f32 %v382, %v408
        %v412 = vmul.f32 %v383, %v408
        %v413 = vmul.f32 %v384, %v408
        %v418 = vrot.slane %v410, 1
        %v419 = vrot.slane %v412, 1
        %v420 = vsel %vm394, %v418, %v419
        %v421 = vrot.slane %v411, 1
        %v422 = vrot.slane %v413, 1
        %v423 = vsel %vm394, %v421, %v422
        %424 = vrot.lane.b32.xlu0 %v420, 120
        %v425 = vpop.permute.xlu0 %424
        %426 = vrot.lane.b32.xlu0 %v423, 120
        %v427 = vpop.permute.xlu0 %426
        %vm428 = vcmask 982016
        %v429 = vsel %vm428, %v425, %v427
        %v431 = vadd.f32 %v380, %v429
        %s432 = scalar_lea.vmem [#allocation8], 72
        %v433 = vld [vmem:[%s432] sm:$0xff]
        %v435 = vrot.slane %v433, 7
        %436 = vrot.lane.b32.xlu0 %v435, 16
        %v437 = vpop.permute.xlu0 %436
        %v439 = vmul.f32 %v381, %v437
        %v440 = vmul.f32 %v382, %v437
        %v441 = vmul.f32 %v383, %v437
        %v442 = vmul.f32 %v384, %v437
        %v447 = vrot.slane %v439, 1
        %v448 = vrot.slane %v441, 1
        %v449 = vsel %vm394, %v447, %v448
        %v450 = vrot.slane %v440, 1
        %v451 = vrot.slane %v442, 1
        %v452 = vsel %vm394, %v450, %v451
        %453 = vrot.lane.b32.xlu0 %v449, 120
        %v454 = vpop.permute.xlu0 %453
        %455 = vrot.lane.b32.xlu0 %v452, 120
        %v456 = vpop.permute.xlu0 %455
        %v457 = vsel %vm428, %v454, %v456
        %v460 = vadd.f32 %v401, %v457
        %v461 = vadd.f32 %v402, %v456
        %s462 = scalar_lea.vmem [#allocation8], 80
        %v463 = vld [vmem:[%s462] sm:$0xff]
        %v465 = vrot.slane %v463, 7
        %466 = vrot.lane.b32.xlu0 %v465, 24
        %v467 = vpop.permute.xlu0 %466
        %v469 = vmul.f32 %v381, %v467
        %v470 = vmul.f32 %v382, %v467
        %v471 = vmul.f32 %v383, %v467
        %v472 = vmul.f32 %v384, %v467
        %v477 = vrot.slane %v469, 1
        %v478 = vrot.slane %v471, 1
        %v479 = vsel %vm394, %v477, %v478
        %v480 = vrot.slane %v470, 1
        %v481 = vrot.slane %v472, 1
        %v482 = vsel %vm394, %v480, %v481
        %483 = vrot.lane.b32.xlu0 %v479, 104
        %v484 = vpop.permute.xlu0 %483
        %485 = vrot.lane.b32.xlu0 %v482, 104
        %v486 = vpop.permute.xlu0 %485
        %vm487 = vcmask 850944
        %v488 = vsel %vm487, %v484, %v486
        %v490 = vadd.f32 %v431, %v488
        %s491 = scalar_lea.vmem [#allocation8], 88
        %v492 = vld [vmem:[%s491] sm:$0xff]
        %v494 = vrot.slane %v492, 7
        %495 = vrot.lane.b32.xlu0 %v494, 32
        %v496 = vpop.permute.xlu0 %495
        %v498 = vmul.f32 %v381, %v496
        %v499 = vmul.f32 %v382, %v496
        %v500 = vmul.f32 %v383, %v496
        %v501 = vmul.f32 %v384, %v496
        %v506 = vrot.slane %v498, 1
        %v507 = vrot.slane %v500, 1
        %v508 = vsel %vm394, %v506, %v507
        %v509 = vrot.slane %v499, 1
        %v510 = vrot.slane %v501, 1
        %v511 = vsel %vm394, %v509, %v510
        %512 = vrot.lane.b32.xlu0 %v508, 104
        %v513 = vpop.permute.xlu0 %512
        %514 = vrot.lane.b32.xlu0 %v511, 104
        %v515 = vpop.permute.xlu0 %514
        %v516 = vsel %vm487, %v513, %v515
        %v519 = vadd.f32 %v460, %v516
        %v520 = vadd.f32 %v461, %v515
        %s521 = scalar_lea.vmem [#allocation8], 96
        %v522 = vld [vmem:[%s521] sm:$0xff]
        %v524 = vrot.slane %v522, 7
        %525 = vrot.lane.b32.xlu0 %v524, 40
        %v526 = vpop.permute.xlu0 %525
        %v528 = vmul.f32 %v381, %v526
        %v529 = vmul.f32 %v382, %v526
        %v530 = vmul.f32 %v383, %v526
        %v531 = vmul.f32 %v384, %v526
        %v536 = vrot.slane %v528, 1
        %v537 = vrot.slane %v530, 1
        %v538 = vsel %vm394, %v536, %v537
        %v539 = vrot.slane %v529, 1
        %v540 = vrot.slane %v531, 1
        %v541 = vsel %vm394, %v539, %v540
        %542 = vrot.lane.b32.xlu0 %v538, 88
        %v543 = vpop.permute.xlu0 %542
        %544 = vrot.lane.b32.xlu0 %v541, 88
        %v545 = vpop.permute.xlu0 %544
        %vm546 = vcmask 719872
        %v547 = vsel %vm546, %v543, %v545
        %v549 = vadd.f32 %v490, %v547
        %s550 = scalar_lea.vmem [#allocation8], 104
        %v551 = vld [vmem:[%s550] sm:$0xff]
        %v553 = vrot.slane %v551, 7
        %554 = vrot.lane.b32.xlu0 %v553, 48
        %v555 = vpop.permute.xlu0 %554
        %v557 = vmul.f32 %v381, %v555
        %v558 = vmul.f32 %v382, %v555
        %v559 = vmul.f32 %v383, %v555
        %v560 = vmul.f32 %v384, %v555
        %v565 = vrot.slane %v557, 1
        %v566 = vrot.slane %v559, 1
        %v567 = vsel %vm394, %v565, %v566
        %v568 = vrot.slane %v558, 1
        %v569 = vrot.slane %v560, 1
        %v570 = vsel %vm394, %v568, %v569
        %571 = vrot.lane.b32.xlu0 %v567, 88
        %v572 = vpop.permute.xlu0 %571
        %573 = vrot.lane.b32.xlu0 %v570, 88
        %v574 = vpop.permute.xlu0 %573
        %v575 = vsel %vm546, %v572, %v574
        %v578 = vadd.f32 %v519, %v575
        %v579 = vadd.f32 %v520, %v574
        %v580 = vld [vmem:[#allocation2] sm:$0xfc]
        %v581 = vld [vmem:[#allocation2 + $0x8] sm:$0xfc]
        %v582 = vld [vmem:[#allocation2 + $0x10] sm:$0x3]
        %v583 = vld [vmem:[#allocation2 + $0x18] sm:$0x3]
        %s584 = scalar_lea.vmem [#allocation8], 112
        %v585 = vld [vmem:[%s584] sm:$0xff]
        %v587 = vrot.slane %v585, 6
        %v589 = vmul.f32 %v580, %v587
        %v590 = vmul.f32 %v582, %v587
        %vm593 = vcmask 1045504
        %v594 = vrot.slane %v589, 2
        %v595 = vrot.slane %v590, 2
        %v596 = vsel %vm593, %v594, %v595
        %v598 = vadd.f32 %v549, %v596
        %s599 = scalar_lea.vmem [#allocation8], 120
        %v600 = vld [vmem:[%s599] sm:$0xff]
        %v602 = vrot.slane %v600, 6
        %603 = vrot.lane.b32.xlu0 %v602, 8
        %v604 = vpop.permute.xlu0 %603
        %v606 = vmul.f32 %v580, %v604
        %v607 = vmul.f32 %v581, %v604
        %v608 = vmul.f32 %v582, %v604
        %v609 = vmul.f32 %v583, %v604
        %v614 = vrot.slane %v606, 2
        %v615 = vrot.slane %v608, 2
        %v616 = vsel %vm593, %v614, %v615
        %v617 = vrot.slane %v607, 2
        %v618 = vrot.slane %v609, 2
        %v619 = vsel %vm593, %v617, %v618
        %v622 = vadd.f32 %v578, %v616
        %v623 = vadd.f32 %v579, %v619
        %s624 = scalar_lea.vmem [#allocation8], 128
        %v625 = vld [vmem:[%s624] sm:$0xff]
        %v627 = vrot.slane %v625, 6
        %628 = vrot.lane.b32.xlu0 %v627, 16
        %v629 = vpop.permute.xlu0 %628
        %v631 = vmul.f32 %v580, %v629
        %v632 = vmul.f32 %v581, %v629
        %v633 = vmul.f32 %v582, %v629
        %v634 = vmul.f32 %v583, %v629
        %v639 = vrot.slane %v631, 2
        %v640 = vrot.slane %v633, 2
        %v641 = vsel %vm593, %v639, %v640
        %v642 = vrot.slane %v632, 2
        %v643 = vrot.slane %v634, 2
        %v644 = vsel %vm593, %v642, %v643
        %645 = vrot.lane.b32.xlu0 %v641, 112
        %v646 = vpop.permute.xlu0 %645
        %647 = vrot.lane.b32.xlu0 %v644, 112
        %v648 = vpop.permute.xlu0 %647
        %v649 = vsel %vm303, %v646, %v648
        %v651 = vadd.f32 %v598, %v649
        %s652 = scalar_lea.vmem [#allocation8], 136
        %v653 = vld [vmem:[%s652] sm:$0xff]
        %v655 = vrot.slane %v653, 6
        %656 = vrot.lane.b32.xlu0 %v655, 24
        %v657 = vpop.permute.xlu0 %656
        %v659 = vmul.f32 %v580, %v657
        %v660 = vmul.f32 %v581, %v657
        %v661 = vmul.f32 %v582, %v657
        %v662 = vmul.f32 %v583, %v657
        %v667 = vrot.slane %v659, 2
        %v668 = vrot.slane %v661, 2
        %v669 = vsel %vm593, %v667, %v668
        %v670 = vrot.slane %v660, 2
        %v671 = vrot.slane %v662, 2
        %v672 = vsel %vm593, %v670, %v671
        %673 = vrot.lane.b32.xlu0 %v669, 112
        %v674 = vpop.permute.xlu0 %673
        %675 = vrot.lane.b32.xlu0 %v672, 112
        %v676 = vpop.permute.xlu0 %675
        %v677 = vsel %vm303, %v674, %v676
        %v680 = vadd.f32 %v622, %v677
        %v681 = vadd.f32 %v623, %v676
        %s682 = scalar_lea.vmem [#allocation8], 144
        %v683 = vld [vmem:[%s682] sm:$0xff]
        %v685 = vrot.slane %v683, 6
        %686 = vrot.lane.b32.xlu0 %v685, 32
        %v687 = vpop.permute.xlu0 %686
        %v689 = vmul.f32 %v580, %v687
        %v690 = vmul.f32 %v581, %v687
        %v691 = vmul.f32 %v582, %v687
        %v692 = vmul.f32 %v583, %v687
        %v697 = vrot.slane %v689, 2
        %v698 = vrot.slane %v691, 2
        %v699 = vsel %vm593, %v697, %v698
        %v700 = vrot.slane %v690, 2
        %v701 = vrot.slane %v692, 2
        %v702 = vsel %vm593, %v700, %v701
        %703 = vrot.lane.b32.xlu0 %v699, 96
        %v704 = vpop.permute.xlu0 %703
        %705 = vrot.lane.b32.xlu0 %v702, 96
        %v706 = vpop.permute.xlu0 %705
        %v707 = vsel %vm340, %v704, %v706
        %v709 = vadd.f32 %v651, %v707
        %s710 = scalar_lea.vmem [#allocation8], 152
        %v711 = vld [vmem:[%s710] sm:$0xff]
        %v713 = vrot.slane %v711, 6
        %714 = vrot.lane.b32.xlu0 %v713, 40
        %v715 = vpop.permute.xlu0 %714
        %v717 = vmul.f32 %v580, %v715
        %v718 = vmul.f32 %v581, %v715
        %v719 = vmul.f32 %v582, %v715
        %v720 = vmul.f32 %v583, %v715
        %v725 = vrot.slane %v717, 2
        %v726 = vrot.slane %v719, 2
        %v727 = vsel %vm593, %v725, %v726
        %v728 = vrot.slane %v718, 2
        %v729 = vrot.slane %v720, 2
        %v730 = vsel %vm593, %v728, %v729
        %731 = vrot.lane.b32.xlu0 %v727, 96
        %v732 = vpop.permute.xlu0 %731
        %733 = vrot.lane.b32.xlu0 %v730, 96
        %v734 = vpop.permute.xlu0 %733
        %v735 = vsel %vm340, %v732, %v734
        %v738 = vadd.f32 %v680, %v735
        %v739 = vadd.f32 %v681, %v734
        %s740 = scalar_lea.vmem [#allocation8], 160
        %v741 = vld [vmem:[%s740] sm:$0xff]
        %v743 = vrot.slane %v741, 6
        %744 = vrot.lane.b32.xlu0 %v743, 48
        %v745 = vpop.permute.xlu0 %744
        %v747 = vmul.f32 %v580, %v745
        %v748 = vmul.f32 %v581, %v745
        %v749 = vmul.f32 %v582, %v745
        %v750 = vmul.f32 %v583, %v745
        %v755 = vrot.slane %v747, 2
        %v756 = vrot.slane %v749, 2
        %v757 = vsel %vm593, %v755, %v756
        %v758 = vrot.slane %v748, 2
        %v759 = vrot.slane %v750, 2
        %v760 = vsel %vm593, %v758, %v759
        %761 = vrot.lane.b32.xlu0 %v757, 80
        %v762 = vpop.permute.xlu0 %761
        %763 = vrot.lane.b32.xlu0 %v760, 80
        %v764 = vpop.permute.xlu0 %763
        %v765 = vsel %vm377, %v762, %v764
        %v767 = vadd.f32 %v709, %v765
        %v768 = vld [vmem:[#allocation2] sm:$0xf8]
        %v769 = vld [vmem:[#allocation2 + $0x8] sm:$0xf8]
        %v770 = vld [vmem:[#allocation2 + $0x10] sm:$0x7]
        %v771 = vld [vmem:[#allocation2 + $0x18] sm:$0x7]
        %s772 = scalar_lea.vmem [#allocation8], 168
        %v773 = vld [vmem:[%s772] sm:$0xff]
        %v775 = vrot.slane %v773, 5
        %v777 = vmul.f32 %v768, %v775
        %v778 = vmul.f32 %v770, %v775
        %vm781 = vcmask 1044480
        %v782 = vrot.slane %v777, 3
        %v783 = vrot.slane %v778, 3
        %v784 = vsel %vm781, %v782, %v783
        %785 = vrot.lane.b32.xlu0 %v784, 8
        %v786 = vpop.permute.xlu0 %785
        %v788 = vadd.f32 %v738, %v786
        %v789 = vadd.f32 %v739, %v786
        %s790 = scalar_lea.vmem [#allocation8], 176
        %v791 = vld [vmem:[%s790] sm:$0xff]
        %v793 = vrot.slane %v791, 5
        %794 = vrot.lane.b32.xlu0 %v793, 8
        %v795 = vpop.permute.xlu0 %794
        %v797 = vmul.f32 %v768, %v795
        %v798 = vmul.f32 %v769, %v795
        %v799 = vmul.f32 %v770, %v795
        %v800 = vmul.f32 %v771, %v795
        %v805 = vrot.slane %v797, 3
        %v806 = vrot.slane %v799, 3
        %v807 = vsel %vm781, %v805, %v806
        %v808 = vrot.slane %v798, 3
        %v809 = vrot.slane %v800, 3
        %v810 = vsel %vm781, %v808, %v809
        %811 = vrot.lane.b32.xlu0 %v807, 120
        %v812 = vpop.permute.xlu0 %811
        %813 = vrot.lane.b32.xlu0 %v810, 120
        %v814 = vpop.permute.xlu0 %813
        %v815 = vsel %vm428, %v812, %v814
        %v817 = vadd.f32 %v767, %v815
        %s818 = scalar_lea.vmem [#allocation8], 184
        %v819 = vld [vmem:[%s818] sm:$0xff]
        %v821 = vrot.slane %v819, 5
        %822 = vrot.lane.b32.xlu0 %v821, 16
        %v823 = vpop.permute.xlu0 %822
        %v825 = vmul.f32 %v768, %v823
        %v826 = vmul.f32 %v769, %v823
        %v827 = vmul.f32 %v770, %v823
        %v828 = vmul.f32 %v771, %v823
        %v833 = vrot.slane %v825, 3
        %v834 = vrot.slane %v827, 3
        %v835 = vsel %vm781, %v833, %v834
        %v836 = vrot.slane %v826, 3
        %v837 = vrot.slane %v828, 3
        %v838 = vsel %vm781, %v836, %v837
        %839 = vrot.lane.b32.xlu0 %v835, 120
        %v840 = vpop.permute.xlu0 %839
        %841 = vrot.lane.b32.xlu0 %v838, 120
        %v842 = vpop.permute.xlu0 %841
        %v843 = vsel %vm428, %v840, %v842
        %v846 = vadd.f32 %v788, %v843
        %v847 = vadd.f32 %v789, %v842
        %s848 = scalar_lea.vmem [#allocation8], 192
        %v849 = vld [vmem:[%s848] sm:$0xff]
        %v851 = vrot.slane %v849, 5
        %852 = vrot.lane.b32.xlu0 %v851, 24
        %v853 = vpop.permute.xlu0 %852
        %v855 = vmul.f32 %v768, %v853
        %v856 = vmul.f32 %v769, %v853
        %v857 = vmul.f32 %v770, %v853
        %v858 = vmul.f32 %v771, %v853
        %v863 = vrot.slane %v855, 3
        %v864 = vrot.slane %v857, 3
        %v865 = vsel %vm781, %v863, %v864
        %v866 = vrot.slane %v856, 3
        %v867 = vrot.slane %v858, 3
        %v868 = vsel %vm781, %v866, %v867
        %869 = vrot.lane.b32.xlu0 %v865, 104
        %v870 = vpop.permute.xlu0 %869
        %871 = vrot.lane.b32.xlu0 %v868, 104
        %v872 = vpop.permute.xlu0 %871
        %v873 = vsel %vm487, %v870, %v872
        %v875 = vadd.f32 %v817, %v873
        %s876 = scalar_lea.vmem [#allocation8], 200
        %v877 = vld [vmem:[%s876] sm:$0xff]
        %v879 = vrot.slane %v877, 5
        %880 = vrot.lane.b32.xlu0 %v879, 32
        %v881 = vpop.permute.xlu0 %880
        %v883 = vmul.f32 %v768, %v881
        %v884 = vmul.f32 %v769, %v881
        %v885 = vmul.f32 %v770, %v881
        %v886 = vmul.f32 %v771, %v881
        %v891 = vrot.slane %v883, 3
        %v892 = vrot.slane %v885, 3
        %v893 = vsel %vm781, %v891, %v892
        %v894 = vrot.slane %v884, 3
        %v895 = vrot.slane %v886, 3
        %v896 = vsel %vm781, %v894, %v895
        %897 = vrot.lane.b32.xlu0 %v893, 104
        %v898 = vpop.permute.xlu0 %897
        %899 = vrot.lane.b32.xlu0 %v896, 104
        %v900 = vpop.permute.xlu0 %899
        %v901 = vsel %vm487, %v898, %v900
        %v904 = vadd.f32 %v846, %v901
        %v905 = vadd.f32 %v847, %v900
        %s906 = scalar_lea.vmem [#allocation8], 208
        %v907 = vld [vmem:[%s906] sm:$0xff]
        %v909 = vrot.slane %v907, 5
        %910 = vrot.lane.b32.xlu0 %v909, 40
        %v911 = vpop.permute.xlu0 %910
        %v913 = vmul.f32 %v768, %v911
        %v914 = vmul.f32 %v769, %v911
        %v915 = vmul.f32 %v770, %v911
        %v916 = vmul.f32 %v771, %v911
        %v921 = vrot.slane %v913, 3
        %v922 = vrot.slane %v915, 3
        %v923 = vsel %vm781, %v921, %v922
        %v924 = vrot.slane %v914, 3
        %v925 = vrot.slane %v916, 3
        %v926 = vsel %vm781, %v924, %v925
        %927 = vrot.lane.b32.xlu0 %v923, 88
        %v928 = vpop.permute.xlu0 %927
        %929 = vrot.lane.b32.xlu0 %v926, 88
        %v930 = vpop.permute.xlu0 %929
        %v931 = vsel %vm546, %v928, %v930
        %v933 = vadd.f32 %v875, %v931
        %s934 = scalar_lea.vmem [#allocation8], 216
        %v935 = vld [vmem:[%s934] sm:$0xff]
        %v937 = vrot.slane %v935, 5
        %938 = vrot.lane.b32.xlu0 %v937, 48
        %v939 = vpop.permute.xlu0 %938
        %v941 = vmul.f32 %v768, %v939
        %v942 = vmul.f32 %v769, %v939
        %v943 = vmul.f32 %v770, %v939
        %v944 = vmul.f32 %v771, %v939
        %v949 = vrot.slane %v941, 3
        %v950 = vrot.slane %v943, 3
        %v951 = vsel %vm781, %v949, %v950
        %v952 = vrot.slane %v942, 3
        %v953 = vrot.slane %v944, 3
        %v954 = vsel %vm781, %v952, %v953
        %955 = vrot.lane.b32.xlu0 %v951, 88
        %v956 = vpop.permute.xlu0 %955
        %957 = vrot.lane.b32.xlu0 %v954, 88
        %v958 = vpop.permute.xlu0 %957
        %v959 = vsel %vm546, %v956, %v958
        %v962 = vadd.f32 %v904, %v959
        %v963 = vadd.f32 %v905, %v958
        %v964 = vld [vmem:[#allocation2] sm:$0xf0]
        %v965 = vld [vmem:[#allocation2 + $0x8] sm:$0xf0]
        %v966 = vld [vmem:[#allocation2 + $0x10] sm:$0xf]
        %v967 = vld [vmem:[#allocation2 + $0x18] sm:$0xf]
        %s968 = scalar_lea.vmem [#allocation8], 224
        %v969 = vld [vmem:[%s968] sm:$0xff]
        %v971 = vrot.slane %v969, 4
        %v973 = vmul.f32 %v964, %v971
        %v974 = vmul.f32 %v966, %v971
        %vm977 = vcmask 1043456
        %v978 = vrot.slane %v973, 4
        %v979 = vrot.slane %v974, 4
        %v980 = vsel %vm977, %v978, %v979
        %v982 = vadd.f32 %v933, %v980
        %s983 = scalar_lea.vmem [#allocation8], 232
        %v984 = vld [vmem:[%s983] sm:$0xff]
        %v986 = vrot.slane %v984, 4
        %987 = vrot.lane.b32.xlu0 %v986, 8
        %v988 = vpop.permute.xlu0 %987
        %v990 = vmul.f32 %v964, %v988
        %v991 = vmul.f32 %v965, %v988
        %v992 = vmul.f32 %v966, %v988
        %v993 = vmul.f32 %v967, %v988
        %v998 = vrot.slane %v990, 4
        %v999 = vrot.slane %v992, 4
        %v1000 = vsel %vm977, %v998, %v999
        %v1001 = vrot.slane %v991, 4
        %v1002 = vrot.slane %v993, 4
        %v1003 = vsel %vm977, %v1001, %v1002
        %v1006 = vadd.f32 %v962, %v1000
        %v1007 = vadd.f32 %v963, %v1003
        %s1008 = scalar_lea.vmem [#allocation8], 240
        %v1009 = vld [vmem:[%s1008] sm:$0xff]
        %v1011 = vrot.slane %v1009, 4
        %1012 = vrot.lane.b32.xlu0 %v1011, 16
        %v1013 = vpop.permute.xlu0 %1012
        %v1015 = vmul.f32 %v964, %v1013
        %v1016 = vmul.f32 %v965, %v1013
        %v1017 = vmul.f32 %v966, %v1013
        %v1018 = vmul.f32 %v967, %v1013
        %v1023 = vrot.slane %v1015, 4
        %v1024 = vrot.slane %v1017, 4
        %v1025 = vsel %vm977, %v1023, %v1024
        %v1026 = vrot.slane %v1016, 4
        %v1027 = vrot.slane %v1018, 4
        %v1028 = vsel %vm977, %v1026, %v1027
        %1029 = vrot.lane.b32.xlu0 %v1025, 112
        %v1030 = vpop.permute.xlu0 %1029
        %1031 = vrot.lane.b32.xlu0 %v1028, 112
        %v1032 = vpop.permute.xlu0 %1031
        %v1033 = vsel %vm303, %v1030, %v1032
        %v1035 = vadd.f32 %v982, %v1033
        %s1036 = scalar_lea.vmem [#allocation8], 248
        %v1037 = vld [vmem:[%s1036] sm:$0xff]
        %v1039 = vrot.slane %v1037, 4
        %1040 = vrot.lane.b32.xlu0 %v1039, 24
        %v1041 = vpop.permute.xlu0 %1040
        %v1043 = vmul.f32 %v964, %v1041
        %v1044 = vmul.f32 %v965, %v1041
        %v1045 = vmul.f32 %v966, %v1041
        %v1046 = vmul.f32 %v967, %v1041
        %v1051 = vrot.slane %v1043, 4
        %v1052 = vrot.slane %v1045, 4
        %v1053 = vsel %vm977, %v1051, %v1052
        %v1054 = vrot.slane %v1044, 4
        %v1055 = vrot.slane %v1046, 4
        %v1056 = vsel %vm977, %v1054, %v1055
        %1057 = vrot.lane.b32.xlu0 %v1053, 112
        %v1058 = vpop.permute.xlu0 %1057
        %1059 = vrot.lane.b32.xlu0 %v1056, 112
        %v1060 = vpop.permute.xlu0 %1059
        %v1061 = vsel %vm303, %v1058, %v1060
        %v1064 = vadd.f32 %v1006, %v1061
        %v1065 = vadd.f32 %v1007, %v1060
        %s1066 = scalar_lea.vmem [#allocation8], 256
        %v1067 = vld [vmem:[%s1066] sm:$0xff]
        %v1069 = vrot.slane %v1067, 4
        %1070 = vrot.lane.b32.xlu0 %v1069, 32
        %v1071 = vpop.permute.xlu0 %1070
        %v1073 = vmul.f32 %v964, %v1071
        %v1074 = vmul.f32 %v965, %v1071
        %v1075 = vmul.f32 %v966, %v1071
        %v1076 = vmul.f32 %v967, %v1071
        %v1081 = vrot.slane %v1073, 4
        %v1082 = vrot.slane %v1075, 4
        %v1083 = vsel %vm977, %v1081, %v1082
        %v1084 = vrot.slane %v1074, 4
        %v1085 = vrot.slane %v1076, 4
        %v1086 = vsel %vm977, %v1084, %v1085
        %1087 = vrot.lane.b32.xlu0 %v1083, 96
        %v1088 = vpop.permute.xlu0 %1087
        %1089 = vrot.lane.b32.xlu0 %v1086, 96
        %v1090 = vpop.permute.xlu0 %1089
        %v1091 = vsel %vm340, %v1088, %v1090
        %v1093 = vadd.f32 %v1035, %v1091
        %s1094 = scalar_lea.vmem [#allocation8], 264
        %v1095 = vld [vmem:[%s1094] sm:$0xff]
        %v1097 = vrot.slane %v1095, 4
        %1098 = vrot.lane.b32.xlu0 %v1097, 40
        %v1099 = vpop.permute.xlu0 %1098
        %v1101 = vmul.f32 %v964, %v1099
        %v1102 = vmul.f32 %v965, %v1099
        %v1103 = vmul.f32 %v966, %v1099
        %v1104 = vmul.f32 %v967, %v1099
        %v1109 = vrot.slane %v1101, 4
        %v1110 = vrot.slane %v1103, 4
        %v1111 = vsel %vm977, %v1109, %v1110
        %v1112 = vrot.slane %v1102, 4
        %v1113 = vrot.slane %v1104, 4
        %v1114 = vsel %vm977, %v1112, %v1113
        %1115 = vrot.lane.b32.xlu0 %v1111, 96
        %v1116 = vpop.permute.xlu0 %1115
        %1117 = vrot.lane.b32.xlu0 %v1114, 96
        %v1118 = vpop.permute.xlu0 %1117
        %v1119 = vsel %vm340, %v1116, %v1118
        %v1122 = vadd.f32 %v1064, %v1119
        %v1123 = vadd.f32 %v1065, %v1118
        %s1124 = scalar_lea.vmem [#allocation8], 272
        %v1125 = vld [vmem:[%s1124] sm:$0xff]
        %v1127 = vrot.slane %v1125, 4
        %1128 = vrot.lane.b32.xlu0 %v1127, 48
        %v1129 = vpop.permute.xlu0 %1128
        %v1131 = vmul.f32 %v964, %v1129
        %v1132 = vmul.f32 %v965, %v1129
        %v1133 = vmul.f32 %v966, %v1129
        %v1134 = vmul.f32 %v967, %v1129
        %v1139 = vrot.slane %v1131, 4
        %v1140 = vrot.slane %v1133, 4
        %v1141 = vsel %vm977, %v1139, %v1140
        %v1142 = vrot.slane %v1132, 4
        %v1143 = vrot.slane %v1134, 4
        %v1144 = vsel %vm977, %v1142, %v1143
        %1145 = vrot.lane.b32.xlu0 %v1141, 80
        %v1146 = vpop.permute.xlu0 %1145
        %1147 = vrot.lane.b32.xlu0 %v1144, 80
        %v1148 = vpop.permute.xlu0 %1147
        %v1149 = vsel %vm377, %v1146, %v1148
        %v1151 = vadd.f32 %v1093, %v1149
        %v1152 = vld [vmem:[#allocation2] sm:$0xe0]
        %v1153 = vld [vmem:[#allocation2 + $0x8] sm:$0xe0]
        %v1154 = vld [vmem:[#allocation2 + $0x10] sm:$0x1f]
        %v1155 = vld [vmem:[#allocation2 + $0x18] sm:$0x1f]
        %s1156 = scalar_lea.vmem [#allocation8], 280
        %v1157 = vld [vmem:[%s1156] sm:$0xff]
        %v1159 = vrot.slane %v1157, 3
        %v1161 = vmul.f32 %v1152, %v1159
        %v1162 = vmul.f32 %v1154, %v1159
        %vm1165 = vcmask 1042432
        %v1166 = vrot.slane %v1161, 5
        %v1167 = vrot.slane %v1162, 5
        %v1168 = vsel %vm1165, %v1166, %v1167
        %1169 = vrot.lane.b32.xlu0 %v1168, 8
        %v1170 = vpop.permute.xlu0 %1169
        %v1172 = vadd.f32 %v1122, %v1170
        %v1173 = vadd.f32 %v1123, %v1170
        %s1174 = scalar_lea.vmem [#allocation8], 288
        %v1175 = vld [vmem:[%s1174] sm:$0xff]
        %v1177 = vrot.slane %v1175, 3
        %1178 = vrot.lane.b32.xlu0 %v1177, 8
        %v1179 = vpop.permute.xlu0 %1178
        %v1181 = vmul.f32 %v1152, %v1179
        %v1182 = vmul.f32 %v1153, %v1179
        %v1183 = vmul.f32 %v1154, %v1179
        %v1184 = vmul.f32 %v1155, %v1179
        %v1189 = vrot.slane %v1181, 5
        %v1190 = vrot.slane %v1183, 5
        %v1191 = vsel %vm1165, %v1189, %v1190
        %v1192 = vrot.slane %v1182, 5
        %v1193 = vrot.slane %v1184, 5
        %v1194 = vsel %vm1165, %v1192, %v1193
        %1195 = vrot.lane.b32.xlu0 %v1191, 120
        %v1196 = vpop.permute.xlu0 %1195
        %1197 = vrot.lane.b32.xlu0 %v1194, 120
        %v1198 = vpop.permute.xlu0 %1197
        %v1199 = vsel %vm428, %v1196, %v1198
        %v1201 = vadd.f32 %v1151, %v1199
        %s1202 = scalar_lea.vmem [#allocation8], 296
        %v1203 = vld [vmem:[%s1202] sm:$0xff]
        %v1205 = vrot.slane %v1203, 3
        %1206 = vrot.lane.b32.xlu0 %v1205, 16
        %v1207 = vpop.permute.xlu0 %1206
        %v1209 = vmul.f32 %v1152, %v1207
        %v1210 = vmul.f32 %v1153, %v1207
        %v1211 = vmul.f32 %v1154, %v1207
        %v1212 = vmul.f32 %v1155, %v1207
        %v1217 = vrot.slane %v1209, 5
        %v1218 = vrot.slane %v1211, 5
        %v1219 = vsel %vm1165, %v1217, %v1218
        %v1220 = vrot.slane %v1210, 5
        %v1221 = vrot.slane %v1212, 5
        %v1222 = vsel %vm1165, %v1220, %v1221
        %1223 = vrot.lane.b32.xlu0 %v1219, 120
        %v1224 = vpop.permute.xlu0 %1223
        %1225 = vrot.lane.b32.xlu0 %v1222, 120
        %v1226 = vpop.permute.xlu0 %1225
        %v1227 = vsel %vm428, %v1224, %v1226
        %v1230 = vadd.f32 %v1172, %v1227
        %v1231 = vadd.f32 %v1173, %v1226
        %s1232 = scalar_lea.vmem [#allocation8], 304
        %v1233 = vld [vmem:[%s1232] sm:$0xff]
        %v1235 = vrot.slane %v1233, 3
        %1236 = vrot.lane.b32.xlu0 %v1235, 24
        %v1237 = vpop.permute.xlu0 %1236
        %v1239 = vmul.f32 %v1152, %v1237
        %v1240 = vmul.f32 %v1153, %v1237
        %v1241 = vmul.f32 %v1154, %v1237
        %v1242 = vmul.f32 %v1155, %v1237
        %v1247 = vrot.slane %v1239, 5
        %v1248 = vrot.slane %v1241, 5
        %v1249 = vsel %vm1165, %v1247, %v1248
        %v1250 = vrot.slane %v1240, 5
        %v1251 = vrot.slane %v1242, 5
        %v1252 = vsel %vm1165, %v1250, %v1251
        %1253 = vrot.lane.b32.xlu0 %v1249, 104
        %v1254 = vpop.permute.xlu0 %1253
        %1255 = vrot.lane.b32.xlu0 %v1252, 104
        %v1256 = vpop.permute.xlu0 %1255
        %v1257 = vsel %vm487, %v1254, %v1256
        %v1259 = vadd.f32 %v1201, %v1257
        %s1260 = scalar_lea.vmem [#allocation8], 312
        %v1261 = vld [vmem:[%s1260] sm:$0xff]
        %v1263 = vrot.slane %v1261, 3
        %1264 = vrot.lane.b32.xlu0 %v1263, 32
        %v1265 = vpop.permute.xlu0 %1264
        %v1267 = vmul.f32 %v1152, %v1265
        %v1268 = vmul.f32 %v1153, %v1265
        %v1269 = vmul.f32 %v1154, %v1265
        %v1270 = vmul.f32 %v1155, %v1265
        %v1275 = vrot.slane %v1267, 5
        %v1276 = vrot.slane %v1269, 5
        %v1277 = vsel %vm1165, %v1275, %v1276
        %v1278 = vrot.slane %v1268, 5
        %v1279 = vrot.slane %v1270, 5
        %v1280 = vsel %vm1165, %v1278, %v1279
        %1281 = vrot.lane.b32.xlu0 %v1277, 104
        %v1282 = vpop.permute.xlu0 %1281
        %1283 = vrot.lane.b32.xlu0 %v1280, 104
        %v1284 = vpop.permute.xlu0 %1283
        %v1285 = vsel %vm487, %v1282, %v1284
        %v1288 = vadd.f32 %v1230, %v1285
        %v1289 = vadd.f32 %v1231, %v1284
        %s1290 = scalar_lea.vmem [#allocation8], 320
        %v1291 = vld [vmem:[%s1290] sm:$0xff]
        %v1293 = vrot.slane %v1291, 3
        %1294 = vrot.lane.b32.xlu0 %v1293, 40
        %v1295 = vpop.permute.xlu0 %1294
        %v1297 = vmul.f32 %v1152, %v1295
        %v1298 = vmul.f32 %v1153, %v1295
        %v1299 = vmul.f32 %v1154, %v1295
        %v1300 = vmul.f32 %v1155, %v1295
        %v1305 = vrot.slane %v1297, 5
        %v1306 = vrot.slane %v1299, 5
        %v1307 = vsel %vm1165, %v1305, %v1306
        %v1308 = vrot.slane %v1298, 5
        %v1309 = vrot.slane %v1300, 5
        %v1310 = vsel %vm1165, %v1308, %v1309
        %1311 = vrot.lane.b32.xlu0 %v1307, 88
        %v1312 = vpop.permute.xlu0 %1311
        %1313 = vrot.lane.b32.xlu0 %v1310, 88
        %v1314 = vpop.permute.xlu0 %1313
        %v1315 = vsel %vm546, %v1312, %v1314
        %v1317 = vadd.f32 %v1259, %v1315
        %s1318 = scalar_lea.vmem [#allocation8], 328
        %v1319 = vld [vmem:[%s1318] sm:$0xff]
        %v1321 = vrot.slane %v1319, 3
        %1322 = vrot.lane.b32.xlu0 %v1321, 48
        %v1323 = vpop.permute.xlu0 %1322
        %v1325 = vmul.f32 %v1152, %v1323
        %v1326 = vmul.f32 %v1153, %v1323
        %v1327 = vmul.f32 %v1154, %v1323
        %v1328 = vmul.f32 %v1155, %v1323
        %v1333 = vrot.slane %v1325, 5
        %v1334 = vrot.slane %v1327, 5
        %v1335 = vsel %vm1165, %v1333, %v1334
        %v1336 = vrot.slane %v1326, 5
        %v1337 = vrot.slane %v1328, 5
        %v1338 = vsel %vm1165, %v1336, %v1337
        %1339 = vrot.lane.b32.xlu0 %v1335, 88
        %v1340 = vpop.permute.xlu0 %1339
        %1341 = vrot.lane.b32.xlu0 %v1338, 88
        %v1342 = vpop.permute.xlu0 %1341
        %v1343 = vsel %vm546, %v1340, %v1342
        %v1346 = vadd.f32 %v1288, %v1343
        %v1347 = vadd.f32 %v1289, %v1342
        %v1348 = vld [vmem:[#allocation2] sm:$0xc0]
        %v1349 = vld [vmem:[#allocation2 + $0x8] sm:$0xc0]
        %v1350 = vld [vmem:[#allocation2 + $0x10] sm:$0x3f]
        %v1351 = vld [vmem:[#allocation2 + $0x18] sm:$0x3f]
        %s1352 = scalar_lea.vmem [#allocation8], 336
        %v1353 = vld [vmem:[%s1352] sm:$0xff]
        %v1355 = vrot.slane %v1353, 2
        %v1357 = vmul.f32 %v1348, %v1355
        %v1358 = vmul.f32 %v1350, %v1355
        %vm1361 = vcmask 1041408
        %v1362 = vrot.slane %v1357, 6
        %v1363 = vrot.slane %v1358, 6
        %v1364 = vsel %vm1361, %v1362, %v1363
        %v1366 = vadd.f32 %v1317, %v1364
        %s1367 = scalar_lea.vmem [#allocation8], 344
        %v1368 = vld [vmem:[%s1367] sm:$0xff]
        %v1370 = vrot.slane %v1368, 2
        %1371 = vrot.lane.b32.xlu0 %v1370, 8
        %v1372 = vpop.permute.xlu0 %1371
        %v1374 = vmul.f32 %v1348, %v1372
        %v1375 = vmul.f32 %v1349, %v1372
        %v1376 = vmul.f32 %v1350, %v1372
        %v1377 = vmul.f32 %v1351, %v1372
        %v1382 = vrot.slane %v1374, 6
        %v1383 = vrot.slane %v1376, 6
        %v1384 = vsel %vm1361, %v1382, %v1383
        %v1385 = vrot.slane %v1375, 6
        %v1386 = vrot.slane %v1377, 6
        %v1387 = vsel %vm1361, %v1385, %v1386
        %v1390 = vadd.f32 %v1346, %v1384
        %v1391 = vadd.f32 %v1347, %v1387
        %s1392 = scalar_lea.vmem [#allocation8], 352
        %v1393 = vld [vmem:[%s1392] sm:$0xff]
        %v1395 = vrot.slane %v1393, 2
        %1396 = vrot.lane.b32.xlu0 %v1395, 16
        %v1397 = vpop.permute.xlu0 %1396
        %v1399 = vmul.f32 %v1348, %v1397
        %v1400 = vmul.f32 %v1349, %v1397
        %v1401 = vmul.f32 %v1350, %v1397
        %v1402 = vmul.f32 %v1351, %v1397
        %v1407 = vrot.slane %v1399, 6
        %v1408 = vrot.slane %v1401, 6
        %v1409 = vsel %vm1361, %v1407, %v1408
        %v1410 = vrot.slane %v1400, 6
        %v1411 = vrot.slane %v1402, 6
        %v1412 = vsel %vm1361, %v1410, %v1411
        %1413 = vrot.lane.b32.xlu0 %v1409, 112
        %v1414 = vpop.permute.xlu0 %1413
        %1415 = vrot.lane.b32.xlu0 %v1412, 112
        %v1416 = vpop.permute.xlu0 %1415
        %v1417 = vsel %vm303, %v1414, %v1416
        %v1419 = vadd.f32 %v1366, %v1417
        %s1420 = scalar_lea.vmem [#allocation8], 360
        %v1421 = vld [vmem:[%s1420] sm:$0xff]
        %v1423 = vrot.slane %v1421, 2
        %1424 = vrot.lane.b32.xlu0 %v1423, 24
        %v1425 = vpop.permute.xlu0 %1424
        %v1427 = vmul.f32 %v1348, %v1425
        %v1428 = vmul.f32 %v1349, %v1425
        %v1429 = vmul.f32 %v1350, %v1425
        %v1430 = vmul.f32 %v1351, %v1425
        %v1435 = vrot.slane %v1427, 6
        %v1436 = vrot.slane %v1429, 6
        %v1437 = vsel %vm1361, %v1435, %v1436
        %v1438 = vrot.slane %v1428, 6
        %v1439 = vrot.slane %v1430, 6
        %v1440 = vsel %vm1361, %v1438, %v1439
        %1441 = vrot.lane.b32.xlu0 %v1437, 112
        %v1442 = vpop.permute.xlu0 %1441
        %1443 = vrot.lane.b32.xlu0 %v1440, 112
        %v1444 = vpop.permute.xlu0 %1443
        %v1445 = vsel %vm303, %v1442, %v1444
        %v1448 = vadd.f32 %v1390, %v1445
        %v1449 = vadd.f32 %v1391, %v1444
        %s1450 = scalar_lea.vmem [#allocation8], 368
        %v1451 = vld [vmem:[%s1450] sm:$0xff]
        %v1453 = vrot.slane %v1451, 2
        %1454 = vrot.lane.b32.xlu0 %v1453, 32
        %v1455 = vpop.permute.xlu0 %1454
        %v1457 = vmul.f32 %v1348, %v1455
        %v1458 = vmul.f32 %v1349, %v1455
        %v1459 = vmul.f32 %v1350, %v1455
        %v1460 = vmul.f32 %v1351, %v1455
        %v1465 = vrot.slane %v1457, 6
        %v1466 = vrot.slane %v1459, 6
        %v1467 = vsel %vm1361, %v1465, %v1466
        %v1468 = vrot.slane %v1458, 6
        %v1469 = vrot.slane %v1460, 6
        %v1470 = vsel %vm1361, %v1468, %v1469
        %1471 = vrot.lane.b32.xlu0 %v1467, 96
        %v1472 = vpop.permute.xlu0 %1471
        %1473 = vrot.lane.b32.xlu0 %v1470, 96
        %v1474 = vpop.permute.xlu0 %1473
        %v1475 = vsel %vm340, %v1472, %v1474
        %v1477 = vadd.f32 %v1419, %v1475
        %s1478 = scalar_lea.vmem [#allocation8], 376
        %v1479 = vld [vmem:[%s1478] sm:$0xff]
        %v1481 = vrot.slane %v1479, 2
        %1482 = vrot.lane.b32.xlu0 %v1481, 40
        %v1483 = vpop.permute.xlu0 %1482
        %v1485 = vmul.f32 %v1348, %v1483
        %v1486 = vmul.f32 %v1349, %v1483
        %v1487 = vmul.f32 %v1350, %v1483
        %v1488 = vmul.f32 %v1351, %v1483
        %v1493 = vrot.slane %v1485, 6
        %v1494 = vrot.slane %v1487, 6
        %v1495 = vsel %vm1361, %v1493, %v1494
        %v1496 = vrot.slane %v1486, 6
        %v1497 = vrot.slane %v1488, 6
        %v1498 = vsel %vm1361, %v1496, %v1497
        %1499 = vrot.lane.b32.xlu0 %v1495, 96
        %v1500 = vpop.permute.xlu0 %1499
        %1501 = vrot.lane.b32.xlu0 %v1498, 96
        %v1502 = vpop.permute.xlu0 %1501
        %v1503 = vsel %vm340, %v1500, %v1502
        %v1506 = vadd.f32 %v1448, %v1503
        %v1507 = vadd.f32 %v1449, %v1502
        %s1508 = scalar_lea.vmem [#allocation8], 384
        %v1509 = vld [vmem:[%s1508] sm:$0xff]
        %v1511 = vrot.slane %v1509, 2
        %1512 = vrot.lane.b32.xlu0 %v1511, 48
        %v1513 = vpop.permute.xlu0 %1512
        %v1515 = vmul.f32 %v1348, %v1513
        %v1516 = vmul.f32 %v1349, %v1513
        %v1517 = vmul.f32 %v1350, %v1513
        %v1518 = vmul.f32 %v1351, %v1513
        %v1523 = vrot.slane %v1515, 6
        %v1524 = vrot.slane %v1517, 6
        %v1525 = vsel %vm1361, %v1523, %v1524
        %v1526 = vrot.slane %v1516, 6
        %v1527 = vrot.slane %v1518, 6
        %v1528 = vsel %vm1361, %v1526, %v1527
        %1529 = vrot.lane.b32.xlu0 %v1525, 80
        %v1530 = vpop.permute.xlu0 %1529
        %1531 = vrot.lane.b32.xlu0 %v1528, 80
        %v1532 = vpop.permute.xlu0 %1531
        %v1533 = vsel %vm377, %v1530, %v1532
        %v1535 = vadd.f32 %v1477, %v1533
        %1538 = vrot.lane.b32.xlu0 %v1506, 120
        %v1539 = vpop.permute.xlu0 %1538
        %1540 = vrot.lane.b32.xlu0 %v1507, 120
        %v1541 = vpop.permute.xlu0 %1540
        %v1542 = vsel %vm428, %v1539, %v1541
        %v1544 = vadd.f32 %v1535, %v1542
        %1545 = vst [vmem:[%s263] sm:$0xff] %v1544
        %s1546 = sand.u32 %s124, 1
        %s1547 = scalar_lea.sflag [#allocation5], %s1546
        %s1548 = sand.u32 %s124, 1
        %s1549 = smul.addr %s1548, 8
        %s1550 = scalar_lea.vmem [#allocation9], %s1549
        // Predicated region
        $region45: #{tpu_custom_call.1} parent=31 // pred_check
          %p1551 = pneg %p134
        $region46: #{tpu_custom_call.1} parent=31 // pred_check_branch
          %1553 = sbr.rel (%p1551) target = $region48
        $region47: #{tpu_custom_call.1} parent=31 // pred_region
          %s1555 = ssub.s32 128, 128
          %1556 = vsyncadd %s1547, %s1555
          %s1557 = smul.addr %s27, 2
          %s1558 = sadd.s32 %s28, %s1557
          %s1559 = smul.addr %s1558, 128
          %s1560 = scalar_lea.hbm %s3, %s1559
          %s1562 = sshll.u32 %s1550, 4
          %s1563 = int_to_ptr.vmem [resolvable:$true] %s1562
          %1565 = dma.vmem_to_hbm [thread:$0]  %s1563, 128, %s1560, %s1547
        $region48: #{tpu_custom_call.1} parent=31 // pred_fallthru
          _
      $region32: #{tpu_custom_call.1} parent=5 // pred_fallthru
        _
      %p1566 = scmp.le.s32.totalorder 2, %s18
      // Predicated region
      $region49: #{tpu_custom_call.1} parent=5 // pred_check
        %p1567 = pneg %p1566
      $region50: #{tpu_custom_call.1} parent=5 // pred_check_branch
        %1569 = sbr.rel (%p1567) target = $region52
      $region51: #{tpu_custom_call.1} parent=5 // pred_region
        %s1570 = ssub.s32 %s18, 2
        // Predicated region
        $region53: #{tpu_custom_call.1} parent=51 // pred_check
          %p1571 = pneg %p140
        $region54: #{tpu_custom_call.1} parent=51 // pred_check_branch
          %1573 = sbr.rel (%p1571) target = $region56
        $region55: #{tpu_custom_call.1} parent=51 // pred_region
          %s1574 = sand.u32 %s125, 1
          %s1575 = scalar_lea.sflag [#allocation5], %s1574
          %s1576 = sand.u32 %s125, 1
          %s1577 = smul.addr %s1576, 8
          %s1578 = scalar_lea.vmem [#allocation9], %s1577
          %1579 = dma.done %s1575, 128
        $region56: #{tpu_custom_call.1} parent=51 // pred_fallthru
          _
      $region52: #{tpu_custom_call.1} parent=5 // pred_fallthru
        _
    $region6: #{tpu_custom_call.1} parent=1 // loop_footer
      %s22 = sadd.s32 1, %s18
    $region7: #{tpu_custom_call.1} parent=1 // loop_footer_branch
      %17 = sbr.rel target = $region3
    $region8: #{tpu_custom_call.1} parent=1 // loop_exit
      _
    %1580 = vsyncpa [#allocation4], 1
    %s1581 = scalar_lea.sflag [#allocation4], 1
    %1582 = vsyncpa %s1581, 1
    %1583 = vsyncpa [#allocation7], 1
    %s1584 = scalar_lea.sflag [#allocation7], 1
    %1585 = vsyncpa %s1584, 1
    %1586 = vsyncpa [#allocation5], 1
    %s1587 = scalar_lea.sflag [#allocation5], 1
    %1588 = vsyncpa %s1587, 1

</llo_original>
